<compile_context>
chip_gen: v7x
topology: tpu7x:2x2x1
jax: 0.10.0
libtpu: 0.0.40
codegen_flags: <defaults>
</compile_context>

<pallas_src>
import functools
import math

import jax
import jax.numpy as jnp
from jax.experimental import pallas as pl
from jax.experimental.pallas import tpu as pltpu

# ----------------------- synthetic BlueBERT config -----------------------
VOCAB = 100
MAX_POS = 16
TYPE_VOCAB = 2
HIDDEN = 32
N_LAYERS = 2
N_HEADS = 2
HEAD_DIM = HIDDEN // N_HEADS
INTERMEDIATE = 64
NUM_CLASSES = 6
LN_EPS = 1e-12
LOGIT_PAD = 128          # lane-dense classifier output width (sliced outside)
PARAM_LANES = 128        # lane padding for packed f32 parameter rows

# per-layer f32 param rows (each lane-0 aligned, padded to PARAM_LANES)
_R_BQKV, _R_BO, _R_BI, _R_BO2, _R_LN1G, _R_LN1B, _R_LN2G, _R_LN2B = range(8)
# global f32 param rows
_G_EMB_G, _G_EMB_B, _G_POOL_B, _G_CLS_B = range(4)


def _gelu(x):
    # TODO(synk): HF BERT default is exact erf-GELU; tanh approximation used
    # because erf lowering in Mosaic is not guaranteed (~1e-3 rel difference).
    c = math.sqrt(2.0 / math.pi)
    return 0.5 * x * (1.0 + jnp.tanh(c * (x + 0.044715 * x * x * x)))


def _layernorm(x, g, b):
    mean = jnp.mean(x, axis=-1, keepdims=True)
    xc = x - mean
    var = jnp.mean(xc * xc, axis=-1, keepdims=True)
    return xc * jax.lax.rsqrt(var + LN_EPS) * g + b


def _mm(x_f32, w_bf16):
    # MXU matmul: bf16 operands, f32 accumulation.
    return jnp.dot(x_f32.astype(jnp.bfloat16), w_bf16,
                   preferred_element_type=jnp.float32)


# --------------------------- fused Pallas kernel ---------------------------

def _fused_bert_kernel(emb_ref, mask_ref, gparams_ref, fparams_ref,
                       wqkv_ref, wo_ref, wi_ref, wo2_ref,
                       pool_w_ref, cls_w_ref, out_ref, *, batch, seq):
    gp = gparams_ref[...]                                   # (4, 128) f32
    mask = mask_ref[...]                                    # (B*S, B*S) additive block-diag mask

    # ---- embedding LayerNorm (embedding dropout is eval-identity) ----
    h = _layernorm(emb_ref[...],
                   gp[_G_EMB_G:_G_EMB_G + 1, :HIDDEN],
                   gp[_G_EMB_B:_G_EMB_B + 1, :HIDDEN])

    for l in range(N_LAYERS):                               # static unroll
        fp = fparams_ref[l]                                 # (8, 128) f32, lane-0 aligned rows
        wqkv = wqkv_ref[l]                                  # (H, 3H) bf16 (q-scale folded)
        wo = wo_ref[l]                                      # (H, H)  bf16
        wi = wi_ref[l]                                      # (H, I)  bf16
        wo2 = wo2_ref[l]                                    # (I, H)  bf16

        # fused QKV projection; activations cast to bf16 once per layer
        qkv = _mm(h, wqkv) + fp[_R_BQKV:_R_BQKV + 1, :3 * HIDDEN]   # (B*S, 3H) f32
        qkv_bf = qkv.astype(jnp.bfloat16)

        # block-diagonal attention over all B*S rows at once, per head;
        # per-head contexts stay in registers and are concatenated once.
        ctx_heads = []
        for hd in range(N_HEADS):
            q0 = hd * HEAD_DIM
            k0 = HIDDEN + hd * HEAD_DIM
            v0 = 2 * HIDDEN + hd * HEAD_DIM
            q = qkv_bf[:, q0:q0 + HEAD_DIM]                  # (B*S, dH) bf16
            k = qkv_bf[:, k0:k0 + HEAD_DIM]
            v = qkv_bf[:, v0:v0 + HEAD_DIM]

            # scores = q @ k^T  (1/sqrt(dH) already folded into wq/bq)
            s = jax.lax.dot_general(q, k, (((1,), (1,)), ((), ())),
                                    preferred_element_type=jnp.float32)  # (B*S, B*S)
            s = s + mask                                     # cross-batch + key padding
            mx = jnp.max(s, axis=-1, keepdims=True)
            p = jnp.exp(s - mx)
            denom = jnp.sum(p, axis=-1, keepdims=True)
            p = p * pl.reciprocal(denom, approx=True)        # EUP recip
            ctx_heads.append(jnp.dot(p.astype(jnp.bfloat16), v,
                                     preferred_element_type=jnp.float32))  # (B*S, dH)
        ctx = jnp.concatenate(ctx_heads, axis=-1)            # (B*S, H) f32, no VMEM roundtrip

        attn_out = _mm(ctx, wo) + fp[_R_BO:_R_BO + 1, :HIDDEN]
        h = _layernorm(attn_out + h,
                       fp[_R_LN1G:_R_LN1G + 1, :HIDDEN],
                       fp[_R_LN1B:_R_LN1B + 1, :HIDDEN])

        inter = _gelu(_mm(h, wi) + fp[_R_BI:_R_BI + 1, :INTERMEDIATE])
        ffn = _mm(inter, wo2) + fp[_R_BO2:_R_BO2 + 1, :HIDDEN]
        h = _layernorm(ffn + h,
                       fp[_R_LN2G:_R_LN2G + 1, :HIDDEN],
                       fp[_R_LN2B:_R_LN2B + 1, :HIDDEN])

    # ---- batched pooler (dense+tanh on [CLS]) + dropout(eval id) + classifier ----
    cls_rows = jnp.concatenate([h[b * seq:b * seq + 1, :] for b in range(batch)],
                               axis=0)                       # (B, H)
    pooled = jnp.tanh(_mm(cls_rows, pool_w_ref[...])
                      + gp[_G_POOL_B:_G_POOL_B + 1, :HIDDEN])
    # single lane-dense (B, 128) unmasked store
    out_ref[...] = _mm(pooled, cls_w_ref[...]) + gp[_G_CLS_B:_G_CLS_B + 1, :]


def fused_bert_forward(emb, add_mask, fused, batch, seq):
    vmem = pl.BlockSpec(memory_space=pltpu.MemorySpace.VMEM)
    kernel = functools.partial(_fused_bert_kernel, batch=batch, seq=seq)
    return pl.pallas_call(
        kernel,
        out_shape=jax.ShapeDtypeStruct((batch, LOGIT_PAD), jnp.float32),
        in_specs=[vmem] * 10,
        out_specs=vmem,
    )(emb, add_mask, fused["gparams"], fused["fparams"],
      fused["wqkv"], fused["wo"], fused["wi"], fused["wo2"],
      fused["pool_w"], fused["cls_w"])


# --------------------------- parameters (glue) ---------------------------

def init_params(key):
    keys = iter(jax.random.split(key, 64))

    def nrm(shape):
        return 0.02 * jax.random.normal(next(keys), shape, jnp.float32)

    params = {
        "word_emb": nrm((VOCAB, HIDDEN)),
        "pos_emb": nrm((MAX_POS, HIDDEN)),
        "type_emb": nrm((TYPE_VOCAB, HIDDEN)),
        "emb_ln_g": jnp.ones((HIDDEN,), jnp.float32),
        "emb_ln_b": jnp.zeros((HIDDEN,), jnp.float32),
        "layers": [],
        "pool_w": nrm((HIDDEN, HIDDEN)),
        "pool_b": jnp.zeros((HIDDEN,), jnp.float32),
        "cls_w": nrm((HIDDEN, NUM_CLASSES)),
        "cls_b": jnp.zeros((NUM_CLASSES,), jnp.float32),
    }
    for _ in range(N_LAYERS):
        params["layers"].append({
            "wq": nrm((HIDDEN, HIDDEN)), "bq": jnp.zeros((HIDDEN,), jnp.float32),
            "wk": nrm((HIDDEN, HIDDEN)), "bk": jnp.zeros((HIDDEN,), jnp.float32),
            "wv": nrm((HIDDEN, HIDDEN)), "bv": jnp.zeros((HIDDEN,), jnp.float32),
            "wo": nrm((HIDDEN, HIDDEN)), "bo": jnp.zeros((HIDDEN,), jnp.float32),
            "ln1_g": jnp.ones((HIDDEN,), jnp.float32),
            "ln1_b": jnp.zeros((HIDDEN,), jnp.float32),
            "wi": nrm((HIDDEN, INTERMEDIATE)),
            "bi": jnp.zeros((INTERMEDIATE,), jnp.float32),
            "wo2": nrm((INTERMEDIATE, HIDDEN)),
            "bo2": jnp.zeros((HIDDEN,), jnp.float32),
            "ln2_g": jnp.ones((HIDDEN,), jnp.float32),
            "ln2_b": jnp.zeros((HIDDEN,), jnp.float32),
        })
    return params


def _pad_lanes(v, width=PARAM_LANES):
    out = jnp.zeros((width,), jnp.float32)
    return out.at[:v.shape[0]].set(v.astype(jnp.float32))


def prepare_fused_params(params):
    """Pack weights for the fused kernel (one-time, outside the kernel)."""
    scale = 1.0 / math.sqrt(HEAD_DIM)
    wqkv, wo, wi, wo2, frows = [], [], [], [], []
    for layer in params["layers"]:
        # fold 1/sqrt(head_dim) into wq / bq so the kernel never scales scores
        wqkv.append(jnp.concatenate(
            [layer["wq"] * scale, layer["wk"], layer["wv"]], axis=1))
        wo.append(layer["wo"])
        wi.append(layer["wi"])
        wo2.append(layer["wo2"])
        # row-per-section, lane-0 aligned f32 params for this layer -> (8, 128)
        frows.append(jnp.stack([
            _pad_lanes(jnp.concatenate([layer["bq"] * scale, layer["bk"], layer["bv"]])),
            _pad_lanes(layer["bo"]),
            _pad_lanes(layer["bi"]),
            _pad_lanes(layer["bo2"]),
            _pad_lanes(layer["ln1_g"]),
            _pad_lanes(layer["ln1_b"]),
            _pad_lanes(layer["ln2_g"]),
            _pad_lanes(layer["ln2_b"]),
        ], axis=0))

    cls_w_pad = jnp.zeros((HIDDEN, LOGIT_PAD), jnp.float32)
    cls_w_pad = cls_w_pad.at[:, :NUM_CLASSES].set(params["cls_w"])

    gparams = jnp.stack([
        _pad_lanes(params["emb_ln_g"]),
        _pad_lanes(params["emb_ln_b"]),
        _pad_lanes(params["pool_b"]),
        _pad_lanes(params["cls_b"]),
    ], axis=0)                                                  # (4, 128)

    return {
        "gparams": gparams,                                     # (4, 128)   f32
        "fparams": jnp.stack(frows, 0),                         # (L, 8, 128) f32
        "wqkv": jnp.stack(wqkv, 0).astype(jnp.bfloat16),        # (L, H, 3H)
        "wo": jnp.stack(wo, 0).astype(jnp.bfloat16),            # (L, H, H)
        "wi": jnp.stack(wi, 0).astype(jnp.bfloat16),            # (L, H, I)
        "wo2": jnp.stack(wo2, 0).astype(jnp.bfloat16),          # (L, I, H)
        "pool_w": params["pool_w"].astype(jnp.bfloat16),        # (H, H)
        "cls_w": cls_w_pad.astype(jnp.bfloat16),                # (H, 128)
    }


# ------------------------------ forward pass ------------------------------

def bert_emotion_forward(params, fused, input_ids, attention_mask,
                         token_type_ids=None):
    B, S = input_ids.shape
    if token_type_ids is None:
        token_type_ids = jnp.zeros((B, S), jnp.int32)

    # ---- embedding gathers are glue; everything else runs in the fused kernel ----
    word = params["word_emb"][input_ids]                       # (B, S, H)
    pos = params["pos_emb"][jnp.arange(S)][None, :, :]         # (1, S, H)
    tok = params["type_emb"][token_type_ids]                   # (B, S, H)
    emb = (word + pos + tok).reshape(B * S, HIDDEN)

    # block-diagonal additive attention mask over the flattened (B*S) rows:
    # 0 where query & key share a batch AND the key is non-padding, else -10000
    # (HF BERT additive-mask convention; cross-batch entries fully suppressed).
    batch_ids = jnp.repeat(jnp.arange(B), S)                   # (B*S,)
    key_ok = attention_mask.reshape(-1) > 0                    # (B*S,)
    allowed = (batch_ids[:, None] == batch_ids[None, :]) & key_ok[None, :]
    add_mask = jnp.where(allowed, 0.0, -10000.0).astype(jnp.float32)  # (B*S, B*S)

    logits_pad = fused_bert_forward(emb, add_mask, fused, B, S)  # (B, 128) lane-dense
    return logits_pad[:, :NUM_CLASSES]


if __name__ == "__main__":
    key = jax.random.PRNGKey(0)
    pkey, ikey = jax.random.split(key, 2)
    params = init_params(pkey)
    fused = prepare_fused_params(params)

    B, S = 2, 8
    input_ids = jax.random.randint(ikey, (B, S), 0, VOCAB, dtype=jnp.int32)
    attention_mask = jnp.ones((B, S), jnp.int32).at[1, 6:].set(0)   # pad last 2 tokens of row 1

    logits = bert_emotion_forward(params, fused, input_ids, attention_mask)
    jax.block_until_ready(logits)
    assert logits.shape == (B, NUM_CLASSES) and logits.dtype == jnp.float32
    assert bool(jnp.all(jnp.isfinite(logits)))
    print("KERNEL_OK")
</pallas_src>

<mosaic_0001>
module attributes {stable_mosaic.version = 11 : i64} {
  func.func @_fused_bert_kernel(%arg0: memref<16x32xf32, #tpu.memory_space<vmem>>, %arg1: memref<16x16xf32, #tpu.memory_space<vmem>>, %arg2: memref<4x128xf32, #tpu.memory_space<vmem>>, %arg3: memref<2x8x128xf32, #tpu.memory_space<vmem>>, %arg4: memref<2x32x96xbf16, #tpu.memory_space<vmem>>, %arg5: memref<2x32x32xbf16, #tpu.memory_space<vmem>>, %arg6: memref<2x32x64xbf16, #tpu.memory_space<vmem>>, %arg7: memref<2x64x32xbf16, #tpu.memory_space<vmem>>, %arg8: memref<32x32xbf16, #tpu.memory_space<vmem>>, %arg9: memref<32x128xbf16, #tpu.memory_space<vmem>>, %arg10: memref<2x128xf32, #tpu.memory_space<vmem>>) attributes {dimension_semantics = [], scalar_prefetch = 0 : i64, scratch_operands = 0 : i64, tpu.core_type = #tpu.core_type<tc>} {
    %c0 = arith.constant 0 : index
    %c0_0 = arith.constant 0 : index
    %0 = vector.load %arg2[%c0, %c0_0] : memref<4x128xf32, #tpu.memory_space<vmem>>, vector<4x128xf32>
    %c0_1 = arith.constant 0 : index
    %c0_2 = arith.constant 0 : index
    %1 = vector.load %arg1[%c0_1, %c0_2] : memref<16x16xf32, #tpu.memory_space<vmem>>, vector<16x16xf32>
    %c0_3 = arith.constant 0 : index
    %c0_4 = arith.constant 0 : index
    %2 = vector.load %arg0[%c0_3, %c0_4] : memref<16x32xf32, #tpu.memory_space<vmem>>, vector<16x32xf32>
    %3 = vector.extract_strided_slice %0 {offsets = [0, 0], sizes = [1, 32], strides = [1, 1]} : vector<4x128xf32> to vector<1x32xf32>
    %4 = vector.extract_strided_slice %0 {offsets = [1, 0], sizes = [1, 32], strides = [1, 1]} : vector<4x128xf32> to vector<1x32xf32>
    %cst = arith.constant dense<0.000000e+00> : vector<16xf32>
    %5 = vector.multi_reduction <add>, %2, %cst [1] : vector<16x32xf32> to vector<16xf32>
    %6 = vector.shape_cast %5 : vector<16xf32> to vector<16x1xf32>
    %cst_5 = arith.constant 3.200000e+01 : f32
    %7 = vector.broadcast %cst_5 : f32 to vector<16x1xf32>
    %8 = arith.divf %6, %7 : vector<16x1xf32>
    %9 = vector.broadcast %8 : vector<16x1xf32> to vector<16x32xf32>
    %10 = arith.subf %2, %9 : vector<16x32xf32>
    %11 = arith.mulf %10, %10 : vector<16x32xf32>
    %cst_6 = arith.constant dense<0.000000e+00> : vector<16xf32>
    %12 = vector.multi_reduction <add>, %11, %cst_6 [1] : vector<16x32xf32> to vector<16xf32>
    %13 = vector.shape_cast %12 : vector<16xf32> to vector<16x1xf32>
    %cst_7 = arith.constant 3.200000e+01 : f32
    %14 = vector.broadcast %cst_7 : f32 to vector<16x1xf32>
    %15 = arith.divf %13, %14 : vector<16x1xf32>
    %cst_8 = arith.constant 9.99999996E-13 : f32
    %16 = vector.broadcast %cst_8 : f32 to vector<16x1xf32>
    %17 = arith.addf %15, %16 : vector<16x1xf32>
    %18 = math.rsqrt %17 : vector<16x1xf32>
    %19 = vector.broadcast %18 : vector<16x1xf32> to vector<16x32xf32>
    %20 = arith.mulf %10, %19 : vector<16x32xf32>
    %21 = vector.broadcast %3 : vector<1x32xf32> to vector<16x32xf32>
    %22 = arith.mulf %20, %21 : vector<16x32xf32>
    %23 = vector.broadcast %4 : vector<1x32xf32> to vector<16x32xf32>
    %24 = arith.addf %22, %23 : vector<16x32xf32>
    %c0_9 = arith.constant 0 : index
    %c0_10 = arith.constant 0 : index
    %c0_11 = arith.constant 0 : index
    %25 = vector.load %arg3[%c0_9, %c0_10, %c0_11] : memref<2x8x128xf32, #tpu.memory_space<vmem>>, vector<1x8x128xf32>
    %26 = vector.shape_cast %25 : vector<1x8x128xf32> to vector<8x128xf32>
    %c0_12 = arith.constant 0 : index
    %c0_13 = arith.constant 0 : index
    %c0_14 = arith.constant 0 : index
    %27 = vector.load %arg4[%c0_12, %c0_13, %c0_14] : memref<2x32x96xbf16, #tpu.memory_space<vmem>>, vector<1x32x96xbf16>
    %28 = vector.shape_cast %27 : vector<1x32x96xbf16> to vector<32x96xbf16>
    %c0_15 = arith.constant 0 : index
    %c0_16 = arith.constant 0 : index
    %c0_17 = arith.constant 0 : index
    %29 = vector.load %arg5[%c0_15, %c0_16, %c0_17] : memref<2x32x32xbf16, #tpu.memory_space<vmem>>, vector<1x32x32xbf16>
    %30 = vector.shape_cast %29 : vector<1x32x32xbf16> to vector<32x32xbf16>
    %c0_18 = arith.constant 0 : index
    %c0_19 = arith.constant 0 : index
    %c0_20 = arith.constant 0 : index
    %31 = vector.load %arg6[%c0_18, %c0_19, %c0_20] : memref<2x32x64xbf16, #tpu.memory_space<vmem>>, vector<1x32x64xbf16>
    %32 = vector.shape_cast %31 : vector<1x32x64xbf16> to vector<32x64xbf16>
    %c0_21 = arith.constant 0 : index
    %c0_22 = arith.constant 0 : index
    %c0_23 = arith.constant 0 : index
    %33 = vector.load %arg7[%c0_21, %c0_22, %c0_23] : memref<2x64x32xbf16, #tpu.memory_space<vmem>>, vector<1x64x32xbf16>
    %34 = vector.shape_cast %33 : vector<1x64x32xbf16> to vector<64x32xbf16>
    %35 = arith.truncf %24 : vector<16x32xf32> to vector<16x32xbf16>
    %cst_24 = arith.constant dense<0.000000e+00> : vector<16x96xf32>
    %36 = tpu.matmul %35, %28, %cst_24 {dimension_numbers = #tpu.dot_dimension_numbers<[1], [0], [0], [1], [0, 0, 1, 1], [], []>} : vector<16x32xbf16>, vector<32x96xbf16>, vector<16x96xf32> -> vector<16x96xf32>
    %37 = vector.extract_strided_slice %26 {offsets = [0, 0], sizes = [1, 96], strides = [1, 1]} : vector<8x128xf32> to vector<1x96xf32>
    %38 = vector.broadcast %37 : vector<1x96xf32> to vector<16x96xf32>
    %39 = arith.addf %36, %38 : vector<16x96xf32>
    %40 = arith.truncf %39 : vector<16x96xf32> to vector<16x96xbf16>
    %41 = vector.extract_strided_slice %40 {offsets = [0, 0], sizes = [16, 16], strides = [1, 1]} : vector<16x96xbf16> to vector<16x16xbf16>
    %42 = vector.extract_strided_slice %40 {offsets = [0, 32], sizes = [16, 16], strides = [1, 1]} : vector<16x96xbf16> to vector<16x16xbf16>
    %43 = vector.extract_strided_slice %40 {offsets = [0, 64], sizes = [16, 16], strides = [1, 1]} : vector<16x96xbf16> to vector<16x16xbf16>
    %cst_25 = arith.constant dense<0.000000e+00> : vector<16x16xf32>
    %44 = tpu.matmul %41, %42, %cst_25 {dimension_numbers = #tpu.dot_dimension_numbers<[1], [1], [0], [0], [0, 0, 1, 0], [], []>} : vector<16x16xbf16>, vector<16x16xbf16>, vector<16x16xf32> -> vector<16x16xf32>
    %45 = arith.addf %44, %1 : vector<16x16xf32>
    %cst_26 = arith.constant dense<0xFF800000> : vector<16xf32>
    %46 = vector.multi_reduction <maximumf>, %45, %cst_26 [1] : vector<16x16xf32> to vector<16xf32>
    %47 = vector.shape_cast %46 : vector<16xf32> to vector<16x1xf32>
    %48 = vector.broadcast %47 : vector<16x1xf32> to vector<16x16xf32>
    %49 = arith.subf %45, %48 : vector<16x16xf32>
    %50 = math.exp %49 : vector<16x16xf32>
    %cst_27 = arith.constant dense<0.000000e+00> : vector<16xf32>
    %51 = vector.multi_reduction <add>, %50, %cst_27 [1] : vector<16x16xf32> to vector<16xf32>
    %52 = vector.shape_cast %51 : vector<16xf32> to vector<16x1xf32>
    %53 = tpu.reciprocal %52 {approx = true} : vector<16x1xf32> -> vector<16x1xf32>
    %54 = vector.broadcast %53 : vector<16x1xf32> to vector<16x16xf32>
    %55 = arith.mulf %50, %54 : vector<16x16xf32>
    %56 = arith.truncf %55 : vector<16x16xf32> to vector<16x16xbf16>
    %cst_28 = arith.constant dense<0.000000e+00> : vector<16x16xf32>
    %57 = tpu.matmul %56, %43, %cst_28 {dimension_numbers = #tpu.dot_dimension_numbers<[1], [0], [0], [1], [0, 0, 1, 1], [], []>} : vector<16x16xbf16>, vector<16x16xbf16>, vector<16x16xf32> -> vector<16x16xf32>
    %58 = vector.extract_strided_slice %40 {offsets = [0, 16], sizes = [16, 16], strides = [1, 1]} : vector<16x96xbf16> to vector<16x16xbf16>
    %59 = vector.extract_strided_slice %40 {offsets = [0, 48], sizes = [16, 16], strides = [1, 1]} : vector<16x96xbf16> to vector<16x16xbf16>
    %60 = vector.extract_strided_slice %40 {offsets = [0, 80], sizes = [16, 16], strides = [1, 1]} : vector<16x96xbf16> to vector<16x16xbf16>
    %cst_29 = arith.constant dense<0.000000e+00> : vector<16x16xf32>
    %61 = tpu.matmul %58, %59, %cst_29 {dimension_numbers = #tpu.dot_dimension_numbers<[1], [1], [0], [0], [0, 0, 1, 0], [], []>} : vector<16x16xbf16>, vector<16x16xbf16>, vector<16x16xf32> -> vector<16x16xf32>
    %62 = arith.addf %61, %1 : vector<16x16xf32>
    %cst_30 = arith.constant dense<0xFF800000> : vector<16xf32>
    %63 = vector.multi_reduction <maximumf>, %62, %cst_30 [1] : vector<16x16xf32> to vector<16xf32>
    %64 = vector.shape_cast %63 : vector<16xf32> to vector<16x1xf32>
    %65 = vector.broadcast %64 : vector<16x1xf32> to vector<16x16xf32>
    %66 = arith.subf %62, %65 : vector<16x16xf32>
    %67 = math.exp %66 : vector<16x16xf32>
    %cst_31 = arith.constant dense<0.000000e+00> : vector<16xf32>
    %68 = vector.multi_reduction <add>, %67, %cst_31 [1] : vector<16x16xf32> to vector<16xf32>
    %69 = vector.shape_cast %68 : vector<16xf32> to vector<16x1xf32>
    %70 = tpu.reciprocal %69 {approx = true} : vector<16x1xf32> -> vector<16x1xf32>
    %71 = vector.broadcast %70 : vector<16x1xf32> to vector<16x16xf32>
    %72 = arith.mulf %67, %71 : vector<16x16xf32>
    %73 = arith.truncf %72 : vector<16x16xf32> to vector<16x16xbf16>
    %cst_32 = arith.constant dense<0.000000e+00> : vector<16x16xf32>
    %74 = tpu.matmul %73, %60, %cst_32 {dimension_numbers = #tpu.dot_dimension_numbers<[1], [0], [0], [1], [0, 0, 1, 1], [], []>} : vector<16x16xbf16>, vector<16x16xbf16>, vector<16x16xf32> -> vector<16x16xf32>
    %75 = tpu.concatenate %57, %74 in 1 : vector<16x16xf32>, vector<16x16xf32> -> vector<16x32xf32>
    %76 = arith.truncf %75 : vector<16x32xf32> to vector<16x32xbf16>
    %cst_33 = arith.constant dense<0.000000e+00> : vector<16x32xf32>
    %77 = tpu.matmul %76, %30, %cst_33 {dimension_numbers = #tpu.dot_dimension_numbers<[1], [0], [0], [1], [0, 0, 1, 1], [], []>} : vector<16x32xbf16>, vector<32x32xbf16>, vector<16x32xf32> -> vector<16x32xf32>
    %78 = vector.extract_strided_slice %26 {offsets = [1, 0], sizes = [1, 32], strides = [1, 1]} : vector<8x128xf32> to vector<1x32xf32>
    %79 = vector.broadcast %78 : vector<1x32xf32> to vector<16x32xf32>
    %80 = arith.addf %77, %79 : vector<16x32xf32>
    %81 = arith.addf %80, %24 : vector<16x32xf32>
    %82 = vector.extract_strided_slice %26 {offsets = [4, 0], sizes = [1, 32], strides = [1, 1]} : vector<8x128xf32> to vector<1x32xf32>
    %83 = vector.extract_strided_slice %26 {offsets = [5, 0], sizes = [1, 32], strides = [1, 1]} : vector<8x128xf32> to vector<1x32xf32>
    %cst_34 = arith.constant dense<0.000000e+00> : vector<16xf32>
    %84 = vector.multi_reduction <add>, %81, %cst_34 [1] : vector<16x32xf32> to vector<16xf32>
    %85 = vector.shape_cast %84 : vector<16xf32> to vector<16x1xf32>
    %cst_35 = arith.constant 3.200000e+01 : f32
    %86 = vector.broadcast %cst_35 : f32 to vector<16x1xf32>
    %87 = arith.divf %85, %86 : vector<16x1xf32>
    %88 = vector.broadcast %87 : vector<16x1xf32> to vector<16x32xf32>
    %89 = arith.subf %81, %88 : vector<16x32xf32>
    %90 = arith.mulf %89, %89 : vector<16x32xf32>
    %cst_36 = arith.constant dense<0.000000e+00> : vector<16xf32>
    %91 = vector.multi_reduction <add>, %90, %cst_36 [1] : vector<16x32xf32> to vector<16xf32>
    %92 = vector.shape_cast %91 : vector<16xf32> to vector<16x1xf32>
    %cst_37 = arith.constant 3.200000e+01 : f32
    %93 = vector.broadcast %cst_37 : f32 to vector<16x1xf32>
    %94 = arith.divf %92, %93 : vector<16x1xf32>
    %cst_38 = arith.constant 9.99999996E-13 : f32
    %95 = vector.broadcast %cst_38 : f32 to vector<16x1xf32>
    %96 = arith.addf %94, %95 : vector<16x1xf32>
    %97 = math.rsqrt %96 : vector<16x1xf32>
    %98 = vector.broadcast %97 : vector<16x1xf32> to vector<16x32xf32>
    %99 = arith.mulf %89, %98 : vector<16x32xf32>
    %100 = vector.broadcast %82 : vector<1x32xf32> to vector<16x32xf32>
    %101 = arith.mulf %99, %100 : vector<16x32xf32>
    %102 = vector.broadcast %83 : vector<1x32xf32> to vector<16x32xf32>
    %103 = arith.addf %101, %102 : vector<16x32xf32>
    %104 = arith.truncf %103 : vector<16x32xf32> to vector<16x32xbf16>
    %cst_39 = arith.constant dense<0.000000e+00> : vector<16x64xf32>
    %105 = tpu.matmul %104, %32, %cst_39 {dimension_numbers = #tpu.dot_dimension_numbers<[1], [0], [0], [1], [0, 0, 1, 1], [], []>} : vector<16x32xbf16>, vector<32x64xbf16>, vector<16x64xf32> -> vector<16x64xf32>
    %106 = vector.extract_strided_slice %26 {offsets = [2, 0], sizes = [1, 64], strides = [1, 1]} : vector<8x128xf32> to vector<1x64xf32>
    %107 = vector.broadcast %106 : vector<1x64xf32> to vector<16x64xf32>
    %108 = arith.addf %105, %107 : vector<16x64xf32>
    %cst_40 = arith.constant 5.000000e-01 : f32
    %109 = vector.broadcast %cst_40 : f32 to vector<16x64xf32>
    %110 = arith.mulf %109, %108 : vector<16x64xf32>
    %cst_41 = arith.constant 4.471500e-02 : f32
    %111 = vector.broadcast %cst_41 : f32 to vector<16x64xf32>
    %112 = arith.mulf %111, %108 : vector<16x64xf32>
    %113 = arith.mulf %112, %108 : vector<16x64xf32>
    %114 = arith.mulf %113, %108 : vector<16x64xf32>
    %115 = arith.addf %108, %114 : vector<16x64xf32>
    %cst_42 = arith.constant 0.797884583 : f32
    %116 = vector.broadcast %cst_42 : f32 to vector<16x64xf32>
    %117 = arith.mulf %116, %115 : vector<16x64xf32>
    %118 = math.tanh %117 : vector<16x64xf32>
    %cst_43 = arith.constant 1.000000e+00 : f32
    %119 = vector.broadcast %cst_43 : f32 to vector<16x64xf32>
    %120 = arith.addf %119, %118 : vector<16x64xf32>
    %121 = arith.mulf %110, %120 : vector<16x64xf32>
    %122 = arith.truncf %121 : vector<16x64xf32> to vector<16x64xbf16>
    %cst_44 = arith.constant dense<0.000000e+00> : vector<16x32xf32>
    %123 = tpu.matmul %122, %34, %cst_44 {dimension_numbers = #tpu.dot_dimension_numbers<[1], [0], [0], [1], [0, 0, 1, 1], [], []>} : vector<16x64xbf16>, vector<64x32xbf16>, vector<16x32xf32> -> vector<16x32xf32>
    %124 = vector.extract_strided_slice %26 {offsets = [3, 0], sizes = [1, 32], strides = [1, 1]} : vector<8x128xf32> to vector<1x32xf32>
    %125 = vector.broadcast %124 : vector<1x32xf32> to vector<16x32xf32>
    %126 = arith.addf %123, %125 : vector<16x32xf32>
    %127 = arith.addf %126, %103 : vector<16x32xf32>
    %128 = vector.extract_strided_slice %26 {offsets = [6, 0], sizes = [1, 32], strides = [1, 1]} : vector<8x128xf32> to vector<1x32xf32>
    %129 = vector.extract_strided_slice %26 {offsets = [7, 0], sizes = [1, 32], strides = [1, 1]} : vector<8x128xf32> to vector<1x32xf32>
    %cst_45 = arith.constant dense<0.000000e+00> : vector<16xf32>
    %130 = vector.multi_reduction <add>, %127, %cst_45 [1] : vector<16x32xf32> to vector<16xf32>
    %131 = vector.shape_cast %130 : vector<16xf32> to vector<16x1xf32>
    %cst_46 = arith.constant 3.200000e+01 : f32
    %132 = vector.broadcast %cst_46 : f32 to vector<16x1xf32>
    %133 = arith.divf %131, %132 : vector<16x1xf32>
    %134 = vector.broadcast %133 : vector<16x1xf32> to vector<16x32xf32>
    %135 = arith.subf %127, %134 : vector<16x32xf32>
    %136 = arith.mulf %135, %135 : vector<16x32xf32>
    %cst_47 = arith.constant dense<0.000000e+00> : vector<16xf32>
    %137 = vector.multi_reduction <add>, %136, %cst_47 [1] : vector<16x32xf32> to vector<16xf32>
    %138 = vector.shape_cast %137 : vector<16xf32> to vector<16x1xf32>
    %cst_48 = arith.constant 3.200000e+01 : f32
    %139 = vector.broadcast %cst_48 : f32 to vector<16x1xf32>
    %140 = arith.divf %138, %139 : vector<16x1xf32>
    %cst_49 = arith.constant 9.99999996E-13 : f32
    %141 = vector.broadcast %cst_49 : f32 to vector<16x1xf32>
    %142 = arith.addf %140, %141 : vector<16x1xf32>
    %143 = math.rsqrt %142 : vector<16x1xf32>
    %144 = vector.broadcast %143 : vector<16x1xf32> to vector<16x32xf32>
    %145 = arith.mulf %135, %144 : vector<16x32xf32>
    %146 = vector.broadcast %128 : vector<1x32xf32> to vector<16x32xf32>
    %147 = arith.mulf %145, %146 : vector<16x32xf32>
    %148 = vector.broadcast %129 : vector<1x32xf32> to vector<16x32xf32>
    %149 = arith.addf %147, %148 : vector<16x32xf32>
    %c1 = arith.constant 1 : index
    %c0_50 = arith.constant 0 : index
    %c0_51 = arith.constant 0 : index
    %150 = vector.load %arg3[%c1, %c0_50, %c0_51] : memref<2x8x128xf32, #tpu.memory_space<vmem>>, vector<1x8x128xf32>
    %151 = vector.shape_cast %150 : vector<1x8x128xf32> to vector<8x128xf32>
    %c1_52 = arith.constant 1 : index
    %c0_53 = arith.constant 0 : index
    %c0_54 = arith.constant 0 : index
    %152 = vector.load %arg4[%c1_52, %c0_53, %c0_54] : memref<2x32x96xbf16, #tpu.memory_space<vmem>>, vector<1x32x96xbf16>
    %153 = vector.shape_cast %152 : vector<1x32x96xbf16> to vector<32x96xbf16>
    %c1_55 = arith.constant 1 : index
    %c0_56 = arith.constant 0 : index
    %c0_57 = arith.constant 0 : index
    %154 = vector.load %arg5[%c1_55, %c0_56, %c0_57] : memref<2x32x32xbf16, #tpu.memory_space<vmem>>, vector<1x32x32xbf16>
    %155 = vector.shape_cast %154 : vector<1x32x32xbf16> to vector<32x32xbf16>
    %c1_58 = arith.constant 1 : index
    %c0_59 = arith.constant 0 : index
    %c0_60 = arith.constant 0 : index
    %156 = vector.load %arg6[%c1_58, %c0_59, %c0_60] : memref<2x32x64xbf16, #tpu.memory_space<vmem>>, vector<1x32x64xbf16>
    %157 = vector.shape_cast %156 : vector<1x32x64xbf16> to vector<32x64xbf16>
    %c1_61 = arith.constant 1 : index
    %c0_62 = arith.constant 0 : index
    %c0_63 = arith.constant 0 : index
    %158 = vector.load %arg7[%c1_61, %c0_62, %c0_63] : memref<2x64x32xbf16, #tpu.memory_space<vmem>>, vector<1x64x32xbf16>
    %159 = vector.shape_cast %158 : vector<1x64x32xbf16> to vector<64x32xbf16>
    %160 = arith.truncf %149 : vector<16x32xf32> to vector<16x32xbf16>
    %cst_64 = arith.constant dense<0.000000e+00> : vector<16x96xf32>
    %161 = tpu.matmul %160, %153, %cst_64 {dimension_numbers = #tpu.dot_dimension_numbers<[1], [0], [0], [1], [0, 0, 1, 1], [], []>} : vector<16x32xbf16>, vector<32x96xbf16>, vector<16x96xf32> -> vector<16x96xf32>
    %162 = vector.extract_strided_slice %151 {offsets = [0, 0], sizes = [1, 96], strides = [1, 1]} : vector<8x128xf32> to vector<1x96xf32>
    %163 = vector.broadcast %162 : vector<1x96xf32> to vector<16x96xf32>
    %164 = arith.addf %161, %163 : vector<16x96xf32>
    %165 = arith.truncf %164 : vector<16x96xf32> to vector<16x96xbf16>
    %166 = vector.extract_strided_slice %165 {offsets = [0, 0], sizes = [16, 16], strides = [1, 1]} : vector<16x96xbf16> to vector<16x16xbf16>
    %167 = vector.extract_strided_slice %165 {offsets = [0, 32], sizes = [16, 16], strides = [1, 1]} : vector<16x96xbf16> to vector<16x16xbf16>
    %168 = vector.extract_strided_slice %165 {offsets = [0, 64], sizes = [16, 16], strides = [1, 1]} : vector<16x96xbf16> to vector<16x16xbf16>
    %cst_65 = arith.constant dense<0.000000e+00> : vector<16x16xf32>
    %169 = tpu.matmul %166, %167, %cst_65 {dimension_numbers = #tpu.dot_dimension_numbers<[1], [1], [0], [0], [0, 0, 1, 0], [], []>} : vector<16x16xbf16>, vector<16x16xbf16>, vector<16x16xf32> -> vector<16x16xf32>
    %170 = arith.addf %169, %1 : vector<16x16xf32>
    %cst_66 = arith.constant dense<0xFF800000> : vector<16xf32>
    %171 = vector.multi_reduction <maximumf>, %170, %cst_66 [1] : vector<16x16xf32> to vector<16xf32>
    %172 = vector.shape_cast %171 : vector<16xf32> to vector<16x1xf32>
    %173 = vector.broadcast %172 : vector<16x1xf32> to vector<16x16xf32>
    %174 = arith.subf %170, %173 : vector<16x16xf32>
    %175 = math.exp %174 : vector<16x16xf32>
    %cst_67 = arith.constant dense<0.000000e+00> : vector<16xf32>
    %176 = vector.multi_reduction <add>, %175, %cst_67 [1] : vector<16x16xf32> to vector<16xf32>
    %177 = vector.shape_cast %176 : vector<16xf32> to vector<16x1xf32>
    %178 = tpu.reciprocal %177 {approx = true} : vector<16x1xf32> -> vector<16x1xf32>
    %179 = vector.broadcast %178 : vector<16x1xf32> to vector<16x16xf32>
    %180 = arith.mulf %175, %179 : vector<16x16xf32>
    %181 = arith.truncf %180 : vector<16x16xf32> to vector<16x16xbf16>
    %cst_68 = arith.constant dense<0.000000e+00> : vector<16x16xf32>
    %182 = tpu.matmul %181, %168, %cst_68 {dimension_numbers = #tpu.dot_dimension_numbers<[1], [0], [0], [1], [0, 0, 1, 1], [], []>} : vector<16x16xbf16>, vector<16x16xbf16>, vector<16x16xf32> -> vector<16x16xf32>
    %183 = vector.extract_strided_slice %165 {offsets = [0, 16], sizes = [16, 16], strides = [1, 1]} : vector<16x96xbf16> to vector<16x16xbf16>
    %184 = vector.extract_strided_slice %165 {offsets = [0, 48], sizes = [16, 16], strides = [1, 1]} : vector<16x96xbf16> to vector<16x16xbf16>
    %185 = vector.extract_strided_slice %165 {offsets = [0, 80], sizes = [16, 16], strides = [1, 1]} : vector<16x96xbf16> to vector<16x16xbf16>
    %cst_69 = arith.constant dense<0.000000e+00> : vector<16x16xf32>
    %186 = tpu.matmul %183, %184, %cst_69 {dimension_numbers = #tpu.dot_dimension_numbers<[1], [1], [0], [0], [0, 0, 1, 0], [], []>} : vector<16x16xbf16>, vector<16x16xbf16>, vector<16x16xf32> -> vector<16x16xf32>
    %187 = arith.addf %186, %1 : vector<16x16xf32>
    %cst_70 = arith.constant dense<0xFF800000> : vector<16xf32>
    %188 = vector.multi_reduction <maximumf>, %187, %cst_70 [1] : vector<16x16xf32> to vector<16xf32>
    %189 = vector.shape_cast %188 : vector<16xf32> to vector<16x1xf32>
    %190 = vector.broadcast %189 : vector<16x1xf32> to vector<16x16xf32>
    %191 = arith.subf %187, %190 : vector<16x16xf32>
    %192 = math.exp %191 : vector<16x16xf32>
    %cst_71 = arith.constant dense<0.000000e+00> : vector<16xf32>
    %193 = vector.multi_reduction <add>, %192, %cst_71 [1] : vector<16x16xf32> to vector<16xf32>
    %194 = vector.shape_cast %193 : vector<16xf32> to vector<16x1xf32>
    %195 = tpu.reciprocal %194 {approx = true} : vector<16x1xf32> -> vector<16x1xf32>
    %196 = vector.broadcast %195 : vector<16x1xf32> to vector<16x16xf32>
    %197 = arith.mulf %192, %196 : vector<16x16xf32>
    %198 = arith.truncf %197 : vector<16x16xf32> to vector<16x16xbf16>
    %cst_72 = arith.constant dense<0.000000e+00> : vector<16x16xf32>
    %199 = tpu.matmul %198, %185, %cst_72 {dimension_numbers = #tpu.dot_dimension_numbers<[1], [0], [0], [1], [0, 0, 1, 1], [], []>} : vector<16x16xbf16>, vector<16x16xbf16>, vector<16x16xf32> -> vector<16x16xf32>
    %200 = tpu.concatenate %182, %199 in 1 : vector<16x16xf32>, vector<16x16xf32> -> vector<16x32xf32>
    %201 = arith.truncf %200 : vector<16x32xf32> to vector<16x32xbf16>
    %cst_73 = arith.constant dense<0.000000e+00> : vector<16x32xf32>
    %202 = tpu.matmul %201, %155, %cst_73 {dimension_numbers = #tpu.dot_dimension_numbers<[1], [0], [0], [1], [0, 0, 1, 1], [], []>} : vector<16x32xbf16>, vector<32x32xbf16>, vector<16x32xf32> -> vector<16x32xf32>
    %203 = vector.extract_strided_slice %151 {offsets = [1, 0], sizes = [1, 32], strides = [1, 1]} : vector<8x128xf32> to vector<1x32xf32>
    %204 = vector.broadcast %203 : vector<1x32xf32> to vector<16x32xf32>
    %205 = arith.addf %202, %204 : vector<16x32xf32>
    %206 = arith.addf %205, %149 : vector<16x32xf32>
    %207 = vector.extract_strided_slice %151 {offsets = [4, 0], sizes = [1, 32], strides = [1, 1]} : vector<8x128xf32> to vector<1x32xf32>
    %208 = vector.extract_strided_slice %151 {offsets = [5, 0], sizes = [1, 32], strides = [1, 1]} : vector<8x128xf32> to vector<1x32xf32>
    %cst_74 = arith.constant dense<0.000000e+00> : vector<16xf32>
    %209 = vector.multi_reduction <add>, %206, %cst_74 [1] : vector<16x32xf32> to vector<16xf32>
    %210 = vector.shape_cast %209 : vector<16xf32> to vector<16x1xf32>
    %cst_75 = arith.constant 3.200000e+01 : f32
    %211 = vector.broadcast %cst_75 : f32 to vector<16x1xf32>
    %212 = arith.divf %210, %211 : vector<16x1xf32>
    %213 = vector.broadcast %212 : vector<16x1xf32> to vector<16x32xf32>
    %214 = arith.subf %206, %213 : vector<16x32xf32>
    %215 = arith.mulf %214, %214 : vector<16x32xf32>
    %cst_76 = arith.constant dense<0.000000e+00> : vector<16xf32>
    %216 = vector.multi_reduction <add>, %215, %cst_76 [1] : vector<16x32xf32> to vector<16xf32>
    %217 = vector.shape_cast %216 : vector<16xf32> to vector<16x1xf32>
    %cst_77 = arith.constant 3.200000e+01 : f32
    %218 = vector.broadcast %cst_77 : f32 to vector<16x1xf32>
    %219 = arith.divf %217, %218 : vector<16x1xf32>
    %cst_78 = arith.constant 9.99999996E-13 : f32
    %220 = vector.broadcast %cst_78 : f32 to vector<16x1xf32>
    %221 = arith.addf %219, %220 : vector<16x1xf32>
    %222 = math.rsqrt %221 : vector<16x1xf32>
    %223 = vector.broadcast %222 : vector<16x1xf32> to vector<16x32xf32>
    %224 = arith.mulf %214, %223 : vector<16x32xf32>
    %225 = vector.broadcast %207 : vector<1x32xf32> to vector<16x32xf32>
    %226 = arith.mulf %224, %225 : vector<16x32xf32>
    %227 = vector.broadcast %208 : vector<1x32xf32> to vector<16x32xf32>
    %228 = arith.addf %226, %227 : vector<16x32xf32>
    %229 = arith.truncf %228 : vector<16x32xf32> to vector<16x32xbf16>
    %cst_79 = arith.constant dense<0.000000e+00> : vector<16x64xf32>
    %230 = tpu.matmul %229, %157, %cst_79 {dimension_numbers = #tpu.dot_dimension_numbers<[1], [0], [0], [1], [0, 0, 1, 1], [], []>} : vector<16x32xbf16>, vector<32x64xbf16>, vector<16x64xf32> -> vector<16x64xf32>
    %231 = vector.extract_strided_slice %151 {offsets = [2, 0], sizes = [1, 64], strides = [1, 1]} : vector<8x128xf32> to vector<1x64xf32>
    %232 = vector.broadcast %231 : vector<1x64xf32> to vector<16x64xf32>
    %233 = arith.addf %230, %232 : vector<16x64xf32>
    %cst_80 = arith.constant 5.000000e-01 : f32
    %234 = vector.broadcast %cst_80 : f32 to vector<16x64xf32>
    %235 = arith.mulf %234, %233 : vector<16x64xf32>
    %cst_81 = arith.constant 4.471500e-02 : f32
    %236 = vector.broadcast %cst_81 : f32 to vector<16x64xf32>
    %237 = arith.mulf %236, %233 : vector<16x64xf32>
    %238 = arith.mulf %237, %233 : vector<16x64xf32>
    %239 = arith.mulf %238, %233 : vector<16x64xf32>
    %240 = arith.addf %233, %239 : vector<16x64xf32>
    %cst_82 = arith.constant 0.797884583 : f32
    %241 = vector.broadcast %cst_82 : f32 to vector<16x64xf32>
    %242 = arith.mulf %241, %240 : vector<16x64xf32>
    %243 = math.tanh %242 : vector<16x64xf32>
    %cst_83 = arith.constant 1.000000e+00 : f32
    %244 = vector.broadcast %cst_83 : f32 to vector<16x64xf32>
    %245 = arith.addf %244, %243 : vector<16x64xf32>
    %246 = arith.mulf %235, %245 : vector<16x64xf32>
    %247 = arith.truncf %246 : vector<16x64xf32> to vector<16x64xbf16>
    %cst_84 = arith.constant dense<0.000000e+00> : vector<16x32xf32>
    %248 = tpu.matmul %247, %159, %cst_84 {dimension_numbers = #tpu.dot_dimension_numbers<[1], [0], [0], [1], [0, 0, 1, 1], [], []>} : vector<16x64xbf16>, vector<64x32xbf16>, vector<16x32xf32> -> vector<16x32xf32>
    %249 = vector.extract_strided_slice %151 {offsets = [3, 0], sizes = [1, 32], strides = [1, 1]} : vector<8x128xf32> to vector<1x32xf32>
    %250 = vector.broadcast %249 : vector<1x32xf32> to vector<16x32xf32>
    %251 = arith.addf %248, %250 : vector<16x32xf32>
    %252 = arith.addf %251, %228 : vector<16x32xf32>
    %253 = vector.extract_strided_slice %151 {offsets = [6, 0], sizes = [1, 32], strides = [1, 1]} : vector<8x128xf32> to vector<1x32xf32>
    %254 = vector.extract_strided_slice %151 {offsets = [7, 0], sizes = [1, 32], strides = [1, 1]} : vector<8x128xf32> to vector<1x32xf32>
    %cst_85 = arith.constant dense<0.000000e+00> : vector<16xf32>
    %255 = vector.multi_reduction <add>, %252, %cst_85 [1] : vector<16x32xf32> to vector<16xf32>
    %256 = vector.shape_cast %255 : vector<16xf32> to vector<16x1xf32>
    %cst_86 = arith.constant 3.200000e+01 : f32
    %257 = vector.broadcast %cst_86 : f32 to vector<16x1xf32>
    %258 = arith.divf %256, %257 : vector<16x1xf32>
    %259 = vector.broadcast %258 : vector<16x1xf32> to vector<16x32xf32>
    %260 = arith.subf %252, %259 : vector<16x32xf32>
    %261 = arith.mulf %260, %260 : vector<16x32xf32>
    %cst_87 = arith.constant dense<0.000000e+00> : vector<16xf32>
    %262 = vector.multi_reduction <add>, %261, %cst_87 [1] : vector<16x32xf32> to vector<16xf32>
    %263 = vector.shape_cast %262 : vector<16xf32> to vector<16x1xf32>
    %cst_88 = arith.constant 3.200000e+01 : f32
    %264 = vector.broadcast %cst_88 : f32 to vector<16x1xf32>
    %265 = arith.divf %263, %264 : vector<16x1xf32>
    %cst_89 = arith.constant 9.99999996E-13 : f32
    %266 = vector.broadcast %cst_89 : f32 to vector<16x1xf32>
    %267 = arith.addf %265, %266 : vector<16x1xf32>
    %268 = math.rsqrt %267 : vector<16x1xf32>
    %269 = vector.broadcast %268 : vector<16x1xf32> to vector<16x32xf32>
    %270 = arith.mulf %260, %269 : vector<16x32xf32>
    %271 = vector.broadcast %253 : vector<1x32xf32> to vector<16x32xf32>
    %272 = arith.mulf %270, %271 : vector<16x32xf32>
    %273 = vector.broadcast %254 : vector<1x32xf32> to vector<16x32xf32>
    %274 = arith.addf %272, %273 : vector<16x32xf32>
    %275 = vector.extract_strided_slice %274 {offsets = [0, 0], sizes = [1, 32], strides = [1, 1]} : vector<16x32xf32> to vector<1x32xf32>
    %276 = vector.extract_strided_slice %274 {offsets = [8, 0], sizes = [1, 32], strides = [1, 1]} : vector<16x32xf32> to vector<1x32xf32>
    %277 = tpu.concatenate %275, %276 in 0 : vector<1x32xf32>, vector<1x32xf32> -> vector<2x32xf32>
    %c0_90 = arith.constant 0 : index
    %c0_91 = arith.constant 0 : index
    %278 = vector.load %arg8[%c0_90, %c0_91] : memref<32x32xbf16, #tpu.memory_space<vmem>>, vector<32x32xbf16>
    %279 = arith.truncf %277 : vector<2x32xf32> to vector<2x32xbf16>
    %cst_92 = arith.constant dense<0.000000e+00> : vector<2x32xf32>
    %280 = tpu.matmul %279, %278, %cst_92 {dimension_numbers = #tpu.dot_dimension_numbers<[1], [0], [0], [1], [0, 0, 1, 1], [], []>} : vector<2x32xbf16>, vector<32x32xbf16>, vector<2x32xf32> -> vector<2x32xf32>
    %281 = vector.extract_strided_slice %0 {offsets = [2, 0], sizes = [1, 32], strides = [1, 1]} : vector<4x128xf32> to vector<1x32xf32>
    %282 = vector.broadcast %281 : vector<1x32xf32> to vector<2x32xf32>
    %283 = arith.addf %280, %282 : vector<2x32xf32>
    %284 = math.tanh %283 : vector<2x32xf32>
    %c0_93 = arith.constant 0 : index
    %c0_94 = arith.constant 0 : index
    %285 = vector.load %arg9[%c0_93, %c0_94] : memref<32x128xbf16, #tpu.memory_space<vmem>>, vector<32x128xbf16>
    %286 = arith.truncf %284 : vector<2x32xf32> to vector<2x32xbf16>
    %cst_95 = arith.constant dense<0.000000e+00> : vector<2x128xf32>
    %287 = tpu.matmul %286, %285, %cst_95 {dimension_numbers = #tpu.dot_dimension_numbers<[1], [0], [0], [1], [0, 0, 1, 1], [], []>} : vector<2x32xbf16>, vector<32x128xbf16>, vector<2x128xf32> -> vector<2x128xf32>
    %288 = vector.extract_strided_slice %0 {offsets = [3, 0], sizes = [1, 128], strides = [1, 1]} : vector<4x128xf32> to vector<1x128xf32>
    %289 = vector.broadcast %288 : vector<1x128xf32> to vector<2x128xf32>
    %290 = arith.addf %287, %289 : vector<2x128xf32>
    %c0_96 = arith.constant 0 : index
    %c0_97 = arith.constant 0 : index
    %291 = vector.load %arg10[%c0_96, %c0_97] : memref<2x128xf32, #tpu.memory_space<vmem>>, vector<2x128xf32>
    tpu.vector_store %arg10[%c0_96, %c0_97], %290 {strides = array<i32>} : memref<2x128xf32, #tpu.memory_space<vmem>>, vector<2x128xf32>,
    return
  }
}

</mosaic_0001>

<llo_original>
// kernel: tpu_custom_call.1
$region0: #{tpu_custom_call.1}
  #allocation0 [shape = 'u32[]', space=smem, size = 0x4, offset = 0x4, fixed_abs, tag = 'smem constant byte address 0x4 - core index']
  #allocation1 [shape = 'u32[144,128]{1,0:T(1,128)}', space=vmem, size = 0x12000, scoped, tag = 'internal scratch']
  %s0 = inlined_call_operand.hbm [shape: f32[16,32], index: 0, kind: input, shape index: {}]
  %s1 = inlined_call_operand.hbm [shape: f32[16,16], index: 1, kind: input, shape index: {}]
  %s2 = inlined_call_operand.hbm [shape: f32[4,128], index: 2, kind: input, shape index: {}]
  %s3 = inlined_call_operand.hbm [shape: f32[2,8,128], index: 3, kind: input, shape index: {}]
  %s4 = inlined_call_operand.vmem [shape: bf16[2,32,96], index: 4, kind: input, shape index: {}]
  %s5 = inlined_call_operand.vmem [shape: bf16[2,32,32], index: 5, kind: input, shape index: {}]
  %s6 = inlined_call_operand.vmem [shape: bf16[2,32,64], index: 6, kind: input, shape index: {}]
  %s7 = inlined_call_operand.vmem [shape: bf16[2,64,32], index: 7, kind: input, shape index: {}]
  %s8 = inlined_call_operand.vmem [shape: bf16[32,32], index: 8, kind: input, shape index: {}]
  %s9 = inlined_call_operand.vmem [shape: bf16[32,128], index: 9, kind: input, shape index: {}]
  %s10 = inlined_call_operand.hbm [shape: f32[2,128], index: 10, kind: output, shape index: {}]
  %s11 = sld [smem:[#allocation0]]
  $region66: #{tpu_custom_call.1} parent=0
    _
  %s13 = ssub.s32 1, %s11
  %s14 = scalar_select 0, %s13, %s11
  $region1: #{tpu_custom_call.1} parent=0
    #allocation2 [shape = 'u8[8192]{0}', space=vmem, size = 0x2000, scoped, tag = 'input window, operand 0, single buffered']
    #allocation3 [shape = 's32[1]{0}', space=sflag, size = 0x4, scoped, tag = 'scoped memory for tpu_custom_call.1']
    #allocation4 [shape = 's32[1]{0}', space=sflag, size = 0x4, scoped, tag = 'scoped memory for tpu_custom_call.1']
    #allocation5 [shape = 'u8[8192]{0}', space=vmem, size = 0x2000, scoped, tag = 'input window, operand 1, single buffered']
    #allocation6 [shape = 's32[1]{0}', space=sflag, size = 0x4, scoped, tag = 'scoped memory for tpu_custom_call.1']
    #allocation7 [shape = 'u8[2048]{0}', space=vmem, size = 0x800, scoped, tag = 'input window, operand 2, single buffered']
    #allocation8 [shape = 'u8[8192]{0}', space=vmem, size = 0x2000, scoped, tag = 'input window, operand 3, single buffered']
    #allocation9 [shape = 's32[1]{0}', space=sflag, size = 0x4, scoped, tag = 'scoped memory for tpu_custom_call.1']
    #allocation10 [shape = 'u8[1024]{0}', space=vmem, size = 0x400, scoped, tag = 'output window, operand 0, single buffered']
    %15 = vsyncpa [#allocation3], 0
    %16 = vsyncpa [#allocation6], 0
    %17 = vsyncpa [#allocation9], 0
    %18 = vsyncpa [#allocation4], 0
    // Predicated region
    $region2: #{tpu_custom_call.1} parent=1 // pred_check
      _
    $region3: #{tpu_custom_call.1} parent=1 // pred_check_branch
      %20 = sbr.rel (0) target = $region5
    $region4: #{tpu_custom_call.1} parent=1 // pred_region
      %s22 = ssub.s32 256, 256
      %23 = vsyncadd [#allocation3], %s22
      %s24 = sshll.u32 [#allocation2], 4
      %s25 = int_to_ptr.vmem [resolvable:$true] %s24
      %30 = dma.hbm_to_vmem [thread:$0]  %s0, 256, %s25, [#allocation3], 128, 128, 8
    $region5: #{tpu_custom_call.1} parent=1 // pred_fallthru
      _
    // Predicated region
    $region6: #{tpu_custom_call.1} parent=1 // pred_check
      _
    $region7: #{tpu_custom_call.1} parent=1 // pred_check_branch
      %32 = sbr.rel (0) target = $region9
    $region8: #{tpu_custom_call.1} parent=1 // pred_region
      %s34 = ssub.s32 256, 256
      %35 = vsyncadd [#allocation6], %s34
      %s36 = sshll.u32 [#allocation5], 4
      %s37 = int_to_ptr.vmem [resolvable:$true] %s36
      %42 = dma.hbm_to_vmem [thread:$0]  %s1, 256, %s37, [#allocation6], 128, 128, 8
    $region9: #{tpu_custom_call.1} parent=1 // pred_fallthru
      _
    // Predicated region
    $region10: #{tpu_custom_call.1} parent=1 // pred_check
      _
    $region11: #{tpu_custom_call.1} parent=1 // pred_check_branch
      %44 = sbr.rel (0) target = $region13
    $region12: #{tpu_custom_call.1} parent=1 // pred_region
      %s46 = ssub.s32 64, 64
      %47 = vsyncadd [#allocation6], %s46
      %s49 = sshll.u32 [#allocation7], 4
      %s50 = int_to_ptr.vmem [resolvable:$true] %s49
      %52 = dma.hbm_to_vmem [thread:$0]  %s2, 64, %s50, [#allocation6]
    $region13: #{tpu_custom_call.1} parent=1 // pred_fallthru
      _
    // Predicated region
    $region14: #{tpu_custom_call.1} parent=1 // pred_check
      _
    $region15: #{tpu_custom_call.1} parent=1 // pred_check_branch
      %54 = sbr.rel (0) target = $region17
    $region16: #{tpu_custom_call.1} parent=1 // pred_region
      %s56 = ssub.s32 256, 256
      %57 = vsyncadd [#allocation9], %s56
      %s58 = sshll.u32 [#allocation8], 4
      %s59 = int_to_ptr.vmem [resolvable:$true] %s58
      %64 = dma.hbm_to_vmem [thread:$0]  %s3, 256, %s59, [#allocation9], 128, 128, 8
    $region17: #{tpu_custom_call.1} parent=1 // pred_fallthru
      _
    // Predicated region
    $region18: #{tpu_custom_call.1} parent=1 // pred_check
      _
    $region19: #{tpu_custom_call.1} parent=1 // pred_check_branch
      %66 = sbr.rel (0) target = $region21
    $region20: #{tpu_custom_call.1} parent=1 // pred_region
      _
    $region21: #{tpu_custom_call.1} parent=1 // pred_fallthru
      _
    // Predicated region
    $region22: #{tpu_custom_call.1} parent=1 // pred_check
      _
    $region23: #{tpu_custom_call.1} parent=1 // pred_check_branch
      %68 = sbr.rel (0) target = $region25
    $region24: #{tpu_custom_call.1} parent=1 // pred_region
      _
    $region25: #{tpu_custom_call.1} parent=1 // pred_fallthru
      _
    // Predicated region
    $region26: #{tpu_custom_call.1} parent=1 // pred_check
      _
    $region27: #{tpu_custom_call.1} parent=1 // pred_check_branch
      %70 = sbr.rel (0) target = $region29
    $region28: #{tpu_custom_call.1} parent=1 // pred_region
      _
    $region29: #{tpu_custom_call.1} parent=1 // pred_fallthru
      _
    // Predicated region
    $region30: #{tpu_custom_call.1} parent=1 // pred_check
      _
    $region31: #{tpu_custom_call.1} parent=1 // pred_check_branch
      %72 = sbr.rel (0) target = $region33
    $region32: #{tpu_custom_call.1} parent=1 // pred_region
      _
    $region33: #{tpu_custom_call.1} parent=1 // pred_fallthru
      _
    // Predicated region
    $region34: #{tpu_custom_call.1} parent=1 // pred_check
      _
    $region35: #{tpu_custom_call.1} parent=1 // pred_check_branch
      %74 = sbr.rel (0) target = $region37
    $region36: #{tpu_custom_call.1} parent=1 // pred_region
      _
    $region37: #{tpu_custom_call.1} parent=1 // pred_fallthru
      _
    // Predicated region
    $region38: #{tpu_custom_call.1} parent=1 // pred_check
      _
    $region39: #{tpu_custom_call.1} parent=1 // pred_check_branch
      %76 = sbr.rel (0) target = $region41
    $region40: #{tpu_custom_call.1} parent=1 // pred_region
      _
    $region41: #{tpu_custom_call.1} parent=1 // pred_fallthru
      _
    // Predicated region
    $region42: #{tpu_custom_call.1} parent=1 // pred_check
      _
    $region43: #{tpu_custom_call.1} parent=1 // pred_check_branch
      %78 = sbr.rel (0) target = $region45
    $region44: #{tpu_custom_call.1} parent=1 // pred_region
      %79 = dma.done [#allocation3], 256
    $region45: #{tpu_custom_call.1} parent=1 // pred_fallthru
      _
    // Predicated region
    $region46: #{tpu_custom_call.1} parent=1 // pred_check
      _
    $region47: #{tpu_custom_call.1} parent=1 // pred_check_branch
      %81 = sbr.rel (0) target = $region49
    $region48: #{tpu_custom_call.1} parent=1 // pred_region
      %82 = dma.done [#allocation6], 256
    $region49: #{tpu_custom_call.1} parent=1 // pred_fallthru
      _
    // Predicated region
    $region50: #{tpu_custom_call.1} parent=1 // pred_check
      _
    $region51: #{tpu_custom_call.1} parent=1 // pred_check_branch
      %84 = sbr.rel (0) target = $region53
    $region52: #{tpu_custom_call.1} parent=1 // pred_region
      %85 = dma.done [#allocation6], 64
    $region53: #{tpu_custom_call.1} parent=1 // pred_fallthru
      _
    // Predicated region
    $region54: #{tpu_custom_call.1} parent=1 // pred_check
      _
    $region55: #{tpu_custom_call.1} parent=1 // pred_check_branch
      %87 = sbr.rel (0) target = $region57
    $region56: #{tpu_custom_call.1} parent=1 // pred_region
      %88 = dma.done [#allocation9], 256
    $region57: #{tpu_custom_call.1} parent=1 // pred_fallthru
      _
    %v90 = vld [vmem:[#allocation7] sm:$0xf]
    %v91 = vld [vmem:[#allocation5] sm:$0xff]
    %v92 = vld [vmem:[#allocation5 + $0x8] sm:$0xff]
    %v93 = vld [vmem:[#allocation2] sm:$0xff]
    %v94 = vld [vmem:[#allocation2 + $0x8] sm:$0xff]
    %vm95 = vcmask 261120
    %v96 = vsel %vm95, %v93, 0.0
    %97 = vadd.xlane.f32.xlu0 %v96
    %v98 = vpop.xlane.xlu0 %97
    %v99 = vsel %vm95, %v94, 0.0
    %100 = vadd.xlane.f32.xlu0 %v99
    %v101 = vpop.xlane.xlu0 %100
    %v102 = vrcp.pop 32.0
    %v103 = vmul.f32 %v98, %v102
    %v104 = vmul.f32 %v101, %v102
    %v105 = vsub.f32 %v93, %v103
    %v106 = vsub.f32 %v94, %v104
    %v107 = vmul.f32 %v105, %v105
    %v108 = vmul.f32 %v106, %v106
    %v109 = vsel %vm95, %v107, 0.0
    %110 = vadd.xlane.f32.xlu0 %v109
    %v111 = vpop.xlane.xlu0 %110
    %v112 = vsel %vm95, %v108, 0.0
    %113 = vadd.xlane.f32.xlu0 %v112
    %v114 = vpop.xlane.xlu0 %113
    %v115 = vmul.f32 %v111, %v102
    %v116 = vmul.f32 %v114, %v102
    %v117 = vadd.f32 %v115, 1e-12
    %v118 = vadd.f32 %v116, 1e-12
    %v119 = vrsqrt.pop %v117
    %v120 = vrsqrt.pop %v118
    %v121 = vmul.f32 %v105, %v119
    %v122 = vmul.f32 %v106, %v120
    %v123 = vlaneseq
    %v124 = vshrl.u32 %v123, 7
    %v125 = vsub.s32 0, %v124
    %v126 = vrot.slane %v90, %v125
    %v127 = vmul.f32 %v121, %v126
    %v128 = vmul.f32 %v122, %v126
    %v129 = vlaneseq
    %v130 = vshrl.u32 %v129, 7
    %v131 = vsub.s32 1, %v130
    %v132 = vrot.slane %v90, %v131
    %v133 = vadd.f32 %v127, %v132
    %v134 = vadd.f32 %v128, %v132
    %v135 = vld [vmem:[#allocation8] sm:$0xff]
    %v136 = vld [vmem:[%s4] sm:$0xf]
    %v137 = vld [vmem:[%s4 + $0x4] sm:$0xf]
    %v138 = vld [vmem:[%s4 + $0x8] sm:$0xf]
    %v139 = vld [vmem:[%s4 + $0xc] sm:$0xf]
    %v140 = vld [vmem:[%s5] sm:$0xf]
    %v141 = vld [vmem:[%s5 + $0x4] sm:$0xf]
    %v142 = vld [vmem:[%s5 + $0x8] sm:$0xf]
    %v143 = vld [vmem:[%s5 + $0xc] sm:$0xf]
    %v144 = vld [vmem:[%s6] sm:$0xf]
    %v145 = vld [vmem:[%s6 + $0x4] sm:$0xf]
    %v146 = vld [vmem:[%s6 + $0x8] sm:$0xf]
    %v147 = vld [vmem:[%s6 + $0xc] sm:$0xf]
    %v148 = vld [vmem:[%s7] sm:$0xf]
    %v149 = vld [vmem:[%s7 + $0x4] sm:$0xf]
    %v150 = vld [vmem:[%s7 + $0x8] sm:$0xf]
    %v151 = vld [vmem:[%s7 + $0xc] sm:$0xf]
    %v152 = vld [vmem:[%s7 + $0x10] sm:$0xf]
    %v153 = vld [vmem:[%s7 + $0x14] sm:$0xf]
    %v154 = vld [vmem:[%s7 + $0x18] sm:$0xf]
    %v155 = vld [vmem:[%s7 + $0x1c] sm:$0xf]
    %v156 = vpack.c.bf16 %v134, %v133
    %v157 = vlaneseq
    %v158 = vshrl.u32 %v157, 7
    %v159 = vsub.s32 0, %v158
    %v160 = vrot.slane %v135, %v159
    %v165 = vunpack.c.l.b16 %v136
    %v166 = vunpack.c.l.b16 %v137
    %v167 = vunpack.c.l.b16 %v138
    %v168 = vunpack.c.l.b16 %v139
    %v169 = vpack.c.b16 %v166, %v165
    %v170 = vpack.c.b16 %v168, %v167
    %v174 = vsel %vm95, %v156, 0
    %176 = vmatprep.subr.bf16.mxu0 0
    %177 = vmatpush1.bf16.msra.mxu0 %v169
    %178 = vmatprep.subr.bf16.mxu0 0
    %179 = vmatpush1.bf16.msra.mxu0 %v170
    %180 = vmatprep.subr.bf16.mxu0 0
    %181 = vmatpush1.bf16.msra.mxu0 0
    %182 = vmatprep.subr.bf16.mxu0 0
    %183 = vmatpush1.bf16.msra.mxu0 0
    %184 = vmatprep.subr.bf16.mxu0 0
    %185 = vmatpush1.bf16.msra.mxu0 0
    %186 = vmatprep.subr.bf16.mxu0 0
    %187 = vmatpush1.bf16.msra.mxu0 0
    %188 = vmatprep.subr.bf16.mxu0 0
    %189 = vmatpush1.bf16.msra.mxu0 0
    %190 = vmatprep.subr.bf16.mxu0 0
    %191 = vmatpush1.bf16.msra.mxu0 0
    %192 = vmatprep.subr.bf16.mxu0 0
    %193 = vmatpush1.bf16.msra.mxu0 0
    %194 = vmatprep.subr.bf16.mxu0 0
    %195 = vmatpush1.bf16.msra.mxu0 0
    %196 = vmatprep.subr.bf16.mxu0 0
    %197 = vmatpush1.bf16.msra.mxu0 0
    %198 = vmatprep.subr.bf16.mxu0 0
    %199 = vmatpush1.bf16.msra.mxu0 0
    %200 = vmatprep.subr.bf16.mxu0 0
    %201 = vmatpush1.bf16.msra.mxu0 0
    %202 = vmatprep.subr.bf16.mxu0 0
    %203 = vmatpush1.bf16.msra.mxu0 0
    %204 = vmatprep.subr.bf16.mxu0 0
    %205 = vmatpush1.bf16.msra.mxu0 0
    %206 = vmatprep.subr.bf16.mxu0 0
    %207 = vmatpush1.bf16.msra.mxu0 0
    %208 = vmatprep.mubr.bf16.mxu0 0
    %209 = vmatmul.mubr.bf16.gmra.mrb[0].mxu0 %v174
    %v210 = vpop.f32.mrb[0].mxu0
    %v211 = vadd.f32 %v160, %v210
    %v212 = vpop.f32.mrb[0].mxu0
    %v213 = vpop.f32.mrb[0].mxu0
    %v214 = vadd.f32 %v160, %v213
    %v215 = vpop.f32.mrb[0].mxu0
    %216 = vdwg.mxu0
    %v217 = vpack.c.bf16 %v214, %v211
    %219 = vrot.lane.b32.xlu0 %v217, 96
    %v220 = vpop.permute.xlu0 %219
    %vm221 = vcmask 130048
    %v223 = vsel %vm221, %v217, 0
    %v226 = vsel %vm221, %v220, 0
    %228 = vmatprep.subr.bf16.mxu0 0
    %229 = vmatpush1.bf16.xpose.msra.mxu0 %v226
    %230 = vmatprep.subr.bf16.mxu0 0
    %231 = vmatpush1.bf16.xpose.msra.mxu0 0
    %232 = vmatprep.subr.bf16.mxu0 0
    %233 = vmatpush1.bf16.xpose.msra.mxu0 0
    %234 = vmatprep.subr.bf16.mxu0 0
    %235 = vmatpush1.bf16.xpose.msra.mxu0 0
    %236 = vmatprep.subr.bf16.mxu0 0
    %237 = vmatpush1.bf16.xpose.msra.mxu0 0
    %238 = vmatprep.subr.bf16.mxu0 0
    %239 = vmatpush1.bf16.xpose.msra.mxu0 0
    %240 = vmatprep.subr.bf16.mxu0 0
    %241 = vmatpush1.bf16.xpose.msra.mxu0 0
    %242 = vmatprep.subr.bf16.mxu0 0
    %243 = vmatpush1.bf16.xpose.msra.mxu0 0
    %244 = vmatprep.subr.bf16.mxu0 0
    %245 = vmatpush1.bf16.xpose.msra.mxu0 0
    %246 = vmatprep.subr.bf16.mxu0 0
    %247 = vmatpush1.bf16.xpose.msra.mxu0 0
    %248 = vmatprep.subr.bf16.mxu0 0
    %249 = vmatpush1.bf16.xpose.msra.mxu0 0
    %250 = vmatprep.subr.bf16.mxu0 0
    %251 = vmatpush1.bf16.xpose.msra.mxu0 0
    %252 = vmatprep.subr.bf16.mxu0 0
    %253 = vmatpush1.bf16.xpose.msra.mxu0 0
    %254 = vmatprep.subr.bf16.mxu0 0
    %255 = vmatpush1.bf16.xpose.msra.mxu0 0
    %256 = vmatprep.subr.bf16.mxu0 0
    %257 = vmatpush1.bf16.xpose.msra.mxu0 0
    %258 = vmatprep.subr.bf16.mxu0 0
    %259 = vmatpush1.bf16.xpose.msra.mxu0 0
    %260 = vmatprep.mubr.bf16.mxu0 0
    %261 = vmatmul.mubr.bf16.gmra.mrb[0].mxu0 %v223
    %v262 = vpop.f32.mrb[0].mxu0
    %v263 = vadd.f32 %v91, %v262
    %v264 = vpop.f32.mrb[0].mxu0
    %v265 = vpop.f32.mrb[0].mxu0
    %v266 = vadd.f32 %v92, %v265
    %v267 = vpop.f32.mrb[0].mxu0
    %268 = vdwg.mxu0
    %v269 = vsel %vm221, %v263, -inf
    %270 = vmax.xlane.f32.xlu0 %v269
    %v271 = vpop.xlane.xlu0 %270
    %v272 = vsel %vm221, %v266, -inf
    %273 = vmax.xlane.f32.xlu0 %v272
    %v274 = vpop.xlane.xlu0 %273
    %v275 = vsub.f32 %v263, %v271
    %v276 = vsub.f32 %v266, %v274
    %v277 = vmul.f32 %v275, 1.442695
    %v278 = vpow.pop %v277
    %v279 = vmul.f32 %v276, 1.442695
    %v280 = vpow.pop %v279
    %v281 = vsel %vm221, %v278, 0.0
    %282 = vadd.xlane.f32.xlu0 %v281
    %v283 = vpop.xlane.xlu0 %282
    %v284 = vsel %vm221, %v280, 0.0
    %285 = vadd.xlane.f32.xlu0 %v284
    %v286 = vpop.xlane.xlu0 %285
    %v287 = vrcp.pop %v283
    %v288 = vrcp.pop %v286
    %v289 = vmul.f32 %v278, %v287
    %v290 = vmul.f32 %v280, %v288
    %v291 = vpack.c.bf16 %v290, %v289
    %292 = vrot.lane.b32.xlu0 %v217, 64
    %v293 = vpop.permute.xlu0 %292
    %v296 = vsel %vm221, %v291, 0
    %298 = vmatprep.subr.bf16.mxu0 0
    %299 = vmatpush1.bf16.msra.mxu0 %v293
    %300 = vmatprep.subr.bf16.mxu0 0
    %301 = vmatpush1.bf16.msra.mxu0 0
    %302 = vmatprep.subr.bf16.mxu0 0
    %303 = vmatpush1.bf16.msra.mxu0 0
    %304 = vmatprep.subr.bf16.mxu0 0
    %305 = vmatpush1.bf16.msra.mxu0 0
    %306 = vmatprep.subr.bf16.mxu0 0
    %307 = vmatpush1.bf16.msra.mxu0 0
    %308 = vmatprep.subr.bf16.mxu0 0
    %309 = vmatpush1.bf16.msra.mxu0 0
    %310 = vmatprep.subr.bf16.mxu0 0
    %311 = vmatpush1.bf16.msra.mxu0 0
    %312 = vmatprep.subr.bf16.mxu0 0
    %313 = vmatpush1.bf16.msra.mxu0 0
    %314 = vmatprep.subr.bf16.mxu0 0
    %315 = vmatpush1.bf16.msra.mxu0 0
    %316 = vmatprep.subr.bf16.mxu0 0
    %317 = vmatpush1.bf16.msra.mxu0 0
    %318 = vmatprep.subr.bf16.mxu0 0
    %319 = vmatpush1.bf16.msra.mxu0 0
    %320 = vmatprep.subr.bf16.mxu0 0
    %321 = vmatpush1.bf16.msra.mxu0 0
    %322 = vmatprep.subr.bf16.mxu0 0
    %323 = vmatpush1.bf16.msra.mxu0 0
    %324 = vmatprep.subr.bf16.mxu0 0
    %325 = vmatpush1.bf16.msra.mxu0 0
    %326 = vmatprep.subr.bf16.mxu0 0
    %327 = vmatpush1.bf16.msra.mxu0 0
    %328 = vmatprep.subr.bf16.mxu0 0
    %329 = vmatpush1.bf16.msra.mxu0 0
    %330 = vmatprep.mubr.bf16.mxu0 0
    %331 = vmatmul.mubr.bf16.gmra.mrb[0].mxu0 %v296
    %v332 = vpop.f32.mrb[0].mxu0
    %v333 = vadd.f32 0.0, %v332
    %v334 = vpop.f32.mrb[0].mxu0
    %v335 = vpop.f32.mrb[0].mxu0
    %v336 = vadd.f32 0.0, %v335
    %v337 = vpop.f32.mrb[0].mxu0
    %338 = vdwg.mxu0
    %339 = vrot.lane.b32.xlu0 %v217, 112
    %v340 = vpop.permute.xlu0 %339
    %341 = vrot.lane.b32.xlu0 %v217, 80
    %v342 = vpop.permute.xlu0 %341
    %v344 = vsel %vm221, %v340, 0
    %v347 = vsel %vm221, %v342, 0
    %349 = vmatprep.subr.bf16.mxu0 0
    %350 = vmatpush1.bf16.xpose.msra.mxu0 %v347
    %351 = vmatprep.subr.bf16.mxu0 0
    %352 = vmatpush1.bf16.xpose.msra.mxu0 0
    %353 = vmatprep.subr.bf16.mxu0 0
    %354 = vmatpush1.bf16.xpose.msra.mxu0 0
    %355 = vmatprep.subr.bf16.mxu0 0
    %356 = vmatpush1.bf16.xpose.msra.mxu0 0
    %357 = vmatprep.subr.bf16.mxu0 0
    %358 = vmatpush1.bf16.xpose.msra.mxu0 0
    %359 = vmatprep.subr.bf16.mxu0 0
    %360 = vmatpush1.bf16.xpose.msra.mxu0 0
    %361 = vmatprep.subr.bf16.mxu0 0
    %362 = vmatpush1.bf16.xpose.msra.mxu0 0
    %363 = vmatprep.subr.bf16.mxu0 0
    %364 = vmatpush1.bf16.xpose.msra.mxu0 0
    %365 = vmatprep.subr.bf16.mxu0 0
    %366 = vmatpush1.bf16.xpose.msra.mxu0 0
    %367 = vmatprep.subr.bf16.mxu0 0
    %368 = vmatpush1.bf16.xpose.msra.mxu0 0
    %369 = vmatprep.subr.bf16.mxu0 0
    %370 = vmatpush1.bf16.xpose.msra.mxu0 0
    %371 = vmatprep.subr.bf16.mxu0 0
    %372 = vmatpush1.bf16.xpose.msra.mxu0 0
    %373 = vmatprep.subr.bf16.mxu0 0
    %374 = vmatpush1.bf16.xpose.msra.mxu0 0
    %375 = vmatprep.subr.bf16.mxu0 0
    %376 = vmatpush1.bf16.xpose.msra.mxu0 0
    %377 = vmatprep.subr.bf16.mxu0 0
    %378 = vmatpush1.bf16.xpose.msra.mxu0 0
    %379 = vmatprep.subr.bf16.mxu0 0
    %380 = vmatpush1.bf16.xpose.msra.mxu0 0
    %381 = vmatprep.mubr.bf16.mxu0 0
    %382 = vmatmul.mubr.bf16.gmra.mrb[0].mxu0 %v344
    %v383 = vpop.f32.mrb[0].mxu0
    %v384 = vadd.f32 %v91, %v383
    %v385 = vpop.f32.mrb[0].mxu0
    %v386 = vpop.f32.mrb[0].mxu0
    %v387 = vadd.f32 %v92, %v386
    %v388 = vpop.f32.mrb[0].mxu0
    %389 = vdwg.mxu0
    %v390 = vsel %vm221, %v384, -inf
    %391 = vmax.xlane.f32.xlu0 %v390
    %v392 = vpop.xlane.xlu0 %391
    %v393 = vsel %vm221, %v387, -inf
    %394 = vmax.xlane.f32.xlu0 %v393
    %v395 = vpop.xlane.xlu0 %394
    %v396 = vsub.f32 %v384, %v392
    %v397 = vsub.f32 %v387, %v395
    %v398 = vmul.f32 %v396, 1.442695
    %v399 = vpow.pop %v398
    %v400 = vmul.f32 %v397, 1.442695
    %v401 = vpow.pop %v400
    %v402 = vsel %vm221, %v399, 0.0
    %403 = vadd.xlane.f32.xlu0 %v402
    %v404 = vpop.xlane.xlu0 %403
    %v405 = vsel %vm221, %v401, 0.0
    %406 = vadd.xlane.f32.xlu0 %v405
    %v407 = vpop.xlane.xlu0 %406
    %v408 = vrcp.pop %v404
    %v409 = vrcp.pop %v407
    %v410 = vmul.f32 %v399, %v408
    %v411 = vmul.f32 %v401, %v409
    %v412 = vpack.c.bf16 %v411, %v410
    %413 = vrot.lane.b32.xlu0 %v217, 48
    %v414 = vpop.permute.xlu0 %413
    %v417 = vsel %vm221, %v412, 0
    %419 = vmatprep.subr.bf16.mxu0 0
    %420 = vmatpush1.bf16.msra.mxu0 %v414
    %421 = vmatprep.subr.bf16.mxu0 0
    %422 = vmatpush1.bf16.msra.mxu0 0
    %423 = vmatprep.subr.bf16.mxu0 0
    %424 = vmatpush1.bf16.msra.mxu0 0
    %425 = vmatprep.subr.bf16.mxu0 0
    %426 = vmatpush1.bf16.msra.mxu0 0
    %427 = vmatprep.subr.bf16.mxu0 0
    %428 = vmatpush1.bf16.msra.mxu0 0
    %429 = vmatprep.subr.bf16.mxu0 0
    %430 = vmatpush1.bf16.msra.mxu0 0
    %431 = vmatprep.subr.bf16.mxu0 0
    %432 = vmatpush1.bf16.msra.mxu0 0
    %433 = vmatprep.subr.bf16.mxu0 0
    %434 = vmatpush1.bf16.msra.mxu0 0
    %435 = vmatprep.subr.bf16.mxu0 0
    %436 = vmatpush1.bf16.msra.mxu0 0
    %437 = vmatprep.subr.bf16.mxu0 0
    %438 = vmatpush1.bf16.msra.mxu0 0
    %439 = vmatprep.subr.bf16.mxu0 0
    %440 = vmatpush1.bf16.msra.mxu0 0
    %441 = vmatprep.subr.bf16.mxu0 0
    %442 = vmatpush1.bf16.msra.mxu0 0
    %443 = vmatprep.subr.bf16.mxu0 0
    %444 = vmatpush1.bf16.msra.mxu0 0
    %445 = vmatprep.subr.bf16.mxu0 0
    %446 = vmatpush1.bf16.msra.mxu0 0
    %447 = vmatprep.subr.bf16.mxu0 0
    %448 = vmatpush1.bf16.msra.mxu0 0
    %449 = vmatprep.subr.bf16.mxu0 0
    %450 = vmatpush1.bf16.msra.mxu0 0
    %451 = vmatprep.mubr.bf16.mxu0 0
    %452 = vmatmul.mubr.bf16.gmra.mrb[0].mxu0 %v417
    %v453 = vpop.f32.mrb[0].mxu0
    %v454 = vadd.f32 0.0, %v453
    %v455 = vpop.f32.mrb[0].mxu0
    %v456 = vpop.f32.mrb[0].mxu0
    %v457 = vadd.f32 0.0, %v456
    %v458 = vpop.f32.mrb[0].mxu0
    %459 = vdwg.mxu0
    %462 = vrot.lane.b32.xlu0 %v454, 16
    %v463 = vpop.permute.xlu0 %462
    %464 = vrot.lane.b32.xlu0 %v457, 16
    %v465 = vpop.permute.xlu0 %464
    %v468 = vsel %vm221, %v333, %v463
    %v469 = vsel %vm221, %v336, %v465
    %v470 = vpack.c.bf16 %v469, %v468
    %v471 = vlaneseq
    %v472 = vshrl.u32 %v471, 7
    %v473 = vsub.s32 1, %v472
    %v474 = vrot.slane %v135, %v473
    %v479 = vunpack.c.l.b16 %v140
    %v480 = vunpack.c.l.b16 %v141
    %v481 = vunpack.c.l.b16 %v142
    %v482 = vunpack.c.l.b16 %v143
    %v483 = vpack.c.b16 %v480, %v479
    %v484 = vpack.c.b16 %v482, %v481
    %v488 = vsel %vm95, %v470, 0
    %490 = vmatprep.subr.bf16.mxu0 0
    %491 = vmatpush1.bf16.msra.mxu0 %v483
    %492 = vmatprep.subr.bf16.mxu0 0
    %493 = vmatpush1.bf16.msra.mxu0 %v484
    %494 = vmatprep.subr.bf16.mxu0 0
    %495 = vmatpush1.bf16.msra.mxu0 0
    %496 = vmatprep.subr.bf16.mxu0 0
    %497 = vmatpush1.bf16.msra.mxu0 0
    %498 = vmatprep.subr.bf16.mxu0 0
    %499 = vmatpush1.bf16.msra.mxu0 0
    %500 = vmatprep.subr.bf16.mxu0 0
    %501 = vmatpush1.bf16.msra.mxu0 0
    %502 = vmatprep.subr.bf16.mxu0 0
    %503 = vmatpush1.bf16.msra.mxu0 0
    %504 = vmatprep.subr.bf16.mxu0 0
    %505 = vmatpush1.bf16.msra.mxu0 0
    %506 = vmatprep.subr.bf16.mxu0 0
    %507 = vmatpush1.bf16.msra.mxu0 0
    %508 = vmatprep.subr.bf16.mxu0 0
    %509 = vmatpush1.bf16.msra.mxu0 0
    %510 = vmatprep.subr.bf16.mxu0 0
    %511 = vmatpush1.bf16.msra.mxu0 0
    %512 = vmatprep.subr.bf16.mxu0 0
    %513 = vmatpush1.bf16.msra.mxu0 0
    %514 = vmatprep.subr.bf16.mxu0 0
    %515 = vmatpush1.bf16.msra.mxu0 0
    %516 = vmatprep.subr.bf16.mxu0 0
    %517 = vmatpush1.bf16.msra.mxu0 0
    %518 = vmatprep.subr.bf16.mxu0 0
    %519 = vmatpush1.bf16.msra.mxu0 0
    %520 = vmatprep.subr.bf16.mxu0 0
    %521 = vmatpush1.bf16.msra.mxu0 0
    %522 = vmatprep.mubr.bf16.mxu0 0
    %523 = vmatmul.mubr.bf16.gmra.mrb[0].mxu0 %v488
    %v524 = vpop.f32.mrb[0].mxu0
    %v525 = vadd.f32 %v474, %v524
    %v526 = vpop.f32.mrb[0].mxu0
    %v527 = vpop.f32.mrb[0].mxu0
    %v528 = vadd.f32 %v474, %v527
    %v529 = vpop.f32.mrb[0].mxu0
    %530 = vdwg.mxu0
    %v531 = vadd.f32 %v525, %v133
    %v532 = vadd.f32 %v528, %v134
    %v533 = vsel %vm95, %v531, 0.0
    %534 = vadd.xlane.f32.xlu0 %v533
    %v535 = vpop.xlane.xlu0 %534
    %v536 = vsel %vm95, %v532, 0.0
    %537 = vadd.xlane.f32.xlu0 %v536
    %v538 = vpop.xlane.xlu0 %537
    %v539 = vmul.f32 %v535, %v102
    %v540 = vmul.f32 %v538, %v102
    %v541 = vsub.f32 %v531, %v539
    %v542 = vsub.f32 %v532, %v540
    %v543 = vmul.f32 %v541, %v541
    %v544 = vmul.f32 %v542, %v542
    %v545 = vsel %vm95, %v543, 0.0
    %546 = vadd.xlane.f32.xlu0 %v545
    %v547 = vpop.xlane.xlu0 %546
    %v548 = vsel %vm95, %v544, 0.0
    %549 = vadd.xlane.f32.xlu0 %v548
    %v550 = vpop.xlane.xlu0 %549
    %v551 = vmul.f32 %v547, %v102
    %v552 = vmul.f32 %v550, %v102
    %v553 = vadd.f32 %v551, 1e-12
    %v554 = vadd.f32 %v552, 1e-12
    %v555 = vrsqrt.pop %v553
    %v556 = vrsqrt.pop %v554
    %v557 = vmul.f32 %v541, %v555
    %v558 = vmul.f32 %v542, %v556
    %v559 = vlaneseq
    %v560 = vshrl.u32 %v559, 7
    %v561 = vsub.s32 4, %v560
    %v562 = vrot.slane %v135, %v561
    %v563 = vmul.f32 %v557, %v562
    %v564 = vmul.f32 %v558, %v562
    %v565 = vlaneseq
    %v566 = vshrl.u32 %v565, 7
    %v567 = vsub.s32 5, %v566
    %v568 = vrot.slane %v135, %v567
    %v569 = vadd.f32 %v563, %v568
    %v570 = vadd.f32 %v564, %v568
    %v571 = vpack.c.bf16 %v570, %v569
    %v572 = vlaneseq
    %v573 = vshrl.u32 %v572, 7
    %v574 = vsub.s32 2, %v573
    %v575 = vrot.slane %v135, %v574
    %v580 = vunpack.c.l.b16 %v144
    %v581 = vunpack.c.l.b16 %v145
    %v582 = vunpack.c.l.b16 %v146
    %v583 = vunpack.c.l.b16 %v147
    %v584 = vpack.c.b16 %v581, %v580
    %v585 = vpack.c.b16 %v583, %v582
    %v589 = vsel %vm95, %v571, 0
    %591 = vmatprep.subr.bf16.mxu0 0
    %592 = vmatpush1.bf16.msra.mxu0 %v584
    %593 = vmatprep.subr.bf16.mxu0 0
    %594 = vmatpush1.bf16.msra.mxu0 %v585
    %595 = vmatprep.subr.bf16.mxu0 0
    %596 = vmatpush1.bf16.msra.mxu0 0
    %597 = vmatprep.subr.bf16.mxu0 0
    %598 = vmatpush1.bf16.msra.mxu0 0
    %599 = vmatprep.subr.bf16.mxu0 0
    %600 = vmatpush1.bf16.msra.mxu0 0
    %601 = vmatprep.subr.bf16.mxu0 0
    %602 = vmatpush1.bf16.msra.mxu0 0
    %603 = vmatprep.subr.bf16.mxu0 0
    %604 = vmatpush1.bf16.msra.mxu0 0
    %605 = vmatprep.subr.bf16.mxu0 0
    %606 = vmatpush1.bf16.msra.mxu0 0
    %607 = vmatprep.subr.bf16.mxu0 0
    %608 = vmatpush1.bf16.msra.mxu0 0
    %609 = vmatprep.subr.bf16.mxu0 0
    %610 = vmatpush1.bf16.msra.mxu0 0
    %611 = vmatprep.subr.bf16.mxu0 0
    %612 = vmatpush1.bf16.msra.mxu0 0
    %613 = vmatprep.subr.bf16.mxu0 0
    %614 = vmatpush1.bf16.msra.mxu0 0
    %615 = vmatprep.subr.bf16.mxu0 0
    %616 = vmatpush1.bf16.msra.mxu0 0
    %617 = vmatprep.subr.bf16.mxu0 0
    %618 = vmatpush1.bf16.msra.mxu0 0
    %619 = vmatprep.subr.bf16.mxu0 0
    %620 = vmatpush1.bf16.msra.mxu0 0
    %621 = vmatprep.subr.bf16.mxu0 0
    %622 = vmatpush1.bf16.msra.mxu0 0
    %623 = vmatprep.mubr.bf16.mxu0 0
    %624 = vmatmul.mubr.bf16.gmra.mrb[0].mxu0 %v589
    %v625 = vpop.f32.mrb[0].mxu0
    %v626 = vadd.f32 %v575, %v625
    %v627 = vpop.f32.mrb[0].mxu0
    %v628 = vpop.f32.mrb[0].mxu0
    %v629 = vadd.f32 %v575, %v628
    %v630 = vpop.f32.mrb[0].mxu0
    %631 = vdwg.mxu0
    %v632 = vmul.f32 %v626, 0.5
    %v633 = vmul.f32 %v629, 0.5
    %v634 = vmul.f32 %v626, 0.044715
    %v635 = vmul.f32 %v629, 0.044715
    %v636 = vmul.f32 %v634, %v626
    %v637 = vmul.f32 %v635, %v629
    %v638 = vmul.f32 %v636, %v626
    %v639 = vmul.f32 %v637, %v629
    %v640 = vadd.f32 %v626, %v638
    %v641 = vadd.f32 %v629, %v639
    %v642 = vmul.f32 %v640, 0.7978846
    %v643 = vmul.f32 %v641, 0.7978846
    %v644 = vtanh.pop %v642
    %v645 = vtanh.pop %v643
    %v646 = vadd.f32 %v644, 1.0
    %v647 = vadd.f32 %v645, 1.0
    %v648 = vmul.f32 %v632, %v646
    %v649 = vmul.f32 %v633, %v647
    %v650 = vpack.c.bf16 %v649, %v648
    %v651 = vlaneseq
    %v652 = vshrl.u32 %v651, 7
    %v653 = vsub.s32 3, %v652
    %v654 = vrot.slane %v135, %v653
    %v663 = vunpack.c.l.b16 %v148
    %v664 = vunpack.c.l.b16 %v149
    %v665 = vunpack.c.l.b16 %v150
    %v666 = vunpack.c.l.b16 %v151
    %v667 = vunpack.c.l.b16 %v152
    %v668 = vunpack.c.l.b16 %v153
    %v669 = vunpack.c.l.b16 %v154
    %v670 = vunpack.c.l.b16 %v155
    %v671 = vpack.c.b16 %v664, %v663
    %v672 = vpack.c.b16 %v666, %v665
    %v673 = vpack.c.b16 %v668, %v667
    %v674 = vpack.c.b16 %v670, %v669
    %vm679 = vcmask 523264
    %v681 = vsel %vm679, %v650, 0
    %683 = vmatprep.subr.bf16.mxu0 0
    %684 = vmatpush1.bf16.msra.mxu0 %v671
    %685 = vmatprep.subr.bf16.mxu0 0
    %686 = vmatpush1.bf16.msra.mxu0 %v672
    %687 = vmatprep.subr.bf16.mxu0 0
    %688 = vmatpush1.bf16.msra.mxu0 %v673
    %689 = vmatprep.subr.bf16.mxu0 0
    %690 = vmatpush1.bf16.msra.mxu0 %v674
    %691 = vmatprep.subr.bf16.mxu0 0
    %692 = vmatpush1.bf16.msra.mxu0 0
    %693 = vmatprep.subr.bf16.mxu0 0
    %694 = vmatpush1.bf16.msra.mxu0 0
    %695 = vmatprep.subr.bf16.mxu0 0
    %696 = vmatpush1.bf16.msra.mxu0 0
    %697 = vmatprep.subr.bf16.mxu0 0
    %698 = vmatpush1.bf16.msra.mxu0 0
    %699 = vmatprep.subr.bf16.mxu0 0
    %700 = vmatpush1.bf16.msra.mxu0 0
    %701 = vmatprep.subr.bf16.mxu0 0
    %702 = vmatpush1.bf16.msra.mxu0 0
    %703 = vmatprep.subr.bf16.mxu0 0
    %704 = vmatpush1.bf16.msra.mxu0 0
    %705 = vmatprep.subr.bf16.mxu0 0
    %706 = vmatpush1.bf16.msra.mxu0 0
    %707 = vmatprep.subr.bf16.mxu0 0
    %708 = vmatpush1.bf16.msra.mxu0 0
    %709 = vmatprep.subr.bf16.mxu0 0
    %710 = vmatpush1.bf16.msra.mxu0 0
    %711 = vmatprep.subr.bf16.mxu0 0
    %712 = vmatpush1.bf16.msra.mxu0 0
    %713 = vmatprep.subr.bf16.mxu0 0
    %714 = vmatpush1.bf16.msra.mxu0 0
    %715 = vmatprep.mubr.bf16.mxu0 0
    %716 = vmatmul.mubr.bf16.gmra.mrb[0].mxu0 %v681
    %v717 = vpop.f32.mrb[0].mxu0
    %v718 = vadd.f32 %v654, %v717
    %v719 = vpop.f32.mrb[0].mxu0
    %v720 = vpop.f32.mrb[0].mxu0
    %v721 = vadd.f32 %v654, %v720
    %v722 = vpop.f32.mrb[0].mxu0
    %723 = vdwg.mxu0
    %v724 = vadd.f32 %v718, %v569
    %v725 = vadd.f32 %v721, %v570
    %v726 = vsel %vm95, %v724, 0.0
    %727 = vadd.xlane.f32.xlu0 %v726
    %v728 = vpop.xlane.xlu0 %727
    %v729 = vsel %vm95, %v725, 0.0
    %730 = vadd.xlane.f32.xlu0 %v729
    %v731 = vpop.xlane.xlu0 %730
    %v732 = vmul.f32 %v728, %v102
    %v733 = vmul.f32 %v731, %v102
    %v734 = vsub.f32 %v724, %v732
    %v735 = vsub.f32 %v725, %v733
    %v736 = vmul.f32 %v734, %v734
    %v737 = vmul.f32 %v735, %v735
    %v738 = vsel %vm95, %v736, 0.0
    %739 = vadd.xlane.f32.xlu0 %v738
    %v740 = vpop.xlane.xlu0 %739
    %v741 = vsel %vm95, %v737, 0.0
    %742 = vadd.xlane.f32.xlu0 %v741
    %v743 = vpop.xlane.xlu0 %742
    %v744 = vmul.f32 %v740, %v102
    %v745 = vmul.f32 %v743, %v102
    %v746 = vadd.f32 %v744, 1e-12
    %v747 = vadd.f32 %v745, 1e-12
    %v748 = vrsqrt.pop %v746
    %v749 = vrsqrt.pop %v747
    %v750 = vmul.f32 %v734, %v748
    %v751 = vmul.f32 %v735, %v749
    %v752 = vlaneseq
    %v753 = vshrl.u32 %v752, 7
    %v754 = vsub.s32 6, %v753
    %v755 = vrot.slane %v135, %v754
    %v756 = vmul.f32 %v750, %v755
    %v757 = vmul.f32 %v751, %v755
    %v758 = vlaneseq
    %v759 = vshrl.u32 %v758, 7
    %v760 = vsub.s32 7, %v759
    %v761 = vrot.slane %v135, %v760
    %v762 = vadd.f32 %v756, %v761
    %v763 = vadd.f32 %v757, %v761
    %s764 = scalar_lea.vmem [#allocation8], 8
    %v765 = vld [vmem:[%s764] sm:$0xff]
    %s766 = scalar_lea.vmem %s4, 16
    %v767 = vld [vmem:[%s766] sm:$0xf]
    %v768 = vld [vmem:[%s766 + $0x4] sm:$0xf]
    %v769 = vld [vmem:[%s766 + $0x8] sm:$0xf]
    %v770 = vld [vmem:[%s766 + $0xc] sm:$0xf]
    %s771 = scalar_lea.vmem %s5, 16
    %v772 = vld [vmem:[%s771] sm:$0xf]
    %v773 = vld [vmem:[%s771 + $0x4] sm:$0xf]
    %v774 = vld [vmem:[%s771 + $0x8] sm:$0xf]
    %v775 = vld [vmem:[%s771 + $0xc] sm:$0xf]
    %s776 = scalar_lea.vmem %s6, 16
    %v777 = vld [vmem:[%s776] sm:$0xf]
    %v778 = vld [vmem:[%s776 + $0x4] sm:$0xf]
    %v779 = vld [vmem:[%s776 + $0x8] sm:$0xf]
    %v780 = vld [vmem:[%s776 + $0xc] sm:$0xf]
    %s781 = scalar_lea.vmem %s7, 32
    %v782 = vld [vmem:[%s781] sm:$0xf]
    %v783 = vld [vmem:[%s781 + $0x4] sm:$0xf]
    %v784 = vld [vmem:[%s781 + $0x8] sm:$0xf]
    %v785 = vld [vmem:[%s781 + $0xc] sm:$0xf]
    %v786 = vld [vmem:[%s781 + $0x10] sm:$0xf]
    %v787 = vld [vmem:[%s781 + $0x14] sm:$0xf]
    %v788 = vld [vmem:[%s781 + $0x18] sm:$0xf]
    %v789 = vld [vmem:[%s781 + $0x1c] sm:$0xf]
    %v790 = vpack.c.bf16 %v763, %v762
    %v791 = vlaneseq
    %v792 = vshrl.u32 %v791, 7
    %v793 = vsub.s32 0, %v792
    %v794 = vrot.slane %v765, %v793
    %v799 = vunpack.c.l.b16 %v767
    %v800 = vunpack.c.l.b16 %v768
    %v801 = vunpack.c.l.b16 %v769
    %v802 = vunpack.c.l.b16 %v770
    %v803 = vpack.c.b16 %v800, %v799
    %v804 = vpack.c.b16 %v802, %v801
    %v808 = vsel %vm95, %v790, 0
    %810 = vmatprep.subr.bf16.mxu0 0
    %811 = vmatpush1.bf16.msra.mxu0 %v803
    %812 = vmatprep.subr.bf16.mxu0 0
    %813 = vmatpush1.bf16.msra.mxu0 %v804
    %814 = vmatprep.subr.bf16.mxu0 0
    %815 = vmatpush1.bf16.msra.mxu0 0
    %816 = vmatprep.subr.bf16.mxu0 0
    %817 = vmatpush1.bf16.msra.mxu0 0
    %818 = vmatprep.subr.bf16.mxu0 0
    %819 = vmatpush1.bf16.msra.mxu0 0
    %820 = vmatprep.subr.bf16.mxu0 0
    %821 = vmatpush1.bf16.msra.mxu0 0
    %822 = vmatprep.subr.bf16.mxu0 0
    %823 = vmatpush1.bf16.msra.mxu0 0
    %824 = vmatprep.subr.bf16.mxu0 0
    %825 = vmatpush1.bf16.msra.mxu0 0
    %826 = vmatprep.subr.bf16.mxu0 0
    %827 = vmatpush1.bf16.msra.mxu0 0
    %828 = vmatprep.subr.bf16.mxu0 0
    %829 = vmatpush1.bf16.msra.mxu0 0
    %830 = vmatprep.subr.bf16.mxu0 0
    %831 = vmatpush1.bf16.msra.mxu0 0
    %832 = vmatprep.subr.bf16.mxu0 0
    %833 = vmatpush1.bf16.msra.mxu0 0
    %834 = vmatprep.subr.bf16.mxu0 0
    %835 = vmatpush1.bf16.msra.mxu0 0
    %836 = vmatprep.subr.bf16.mxu0 0
    %837 = vmatpush1.bf16.msra.mxu0 0
    %838 = vmatprep.subr.bf16.mxu0 0
    %839 = vmatpush1.bf16.msra.mxu0 0
    %840 = vmatprep.subr.bf16.mxu0 0
    %841 = vmatpush1.bf16.msra.mxu0 0
    %842 = vmatprep.mubr.bf16.mxu0 0
    %843 = vmatmul.mubr.bf16.gmra.mrb[0].mxu0 %v808
    %v844 = vpop.f32.mrb[0].mxu0
    %v845 = vadd.f32 %v794, %v844
    %v846 = vpop.f32.mrb[0].mxu0
    %v847 = vpop.f32.mrb[0].mxu0
    %v848 = vadd.f32 %v794, %v847
    %v849 = vpop.f32.mrb[0].mxu0
    %850 = vdwg.mxu0
    %v851 = vpack.c.bf16 %v848, %v845
    %853 = vrot.lane.b32.xlu0 %v851, 96
    %v854 = vpop.permute.xlu0 %853
    %v856 = vsel %vm221, %v851, 0
    %v859 = vsel %vm221, %v854, 0
    %861 = vmatprep.subr.bf16.mxu0 0
    %862 = vmatpush1.bf16.xpose.msra.mxu0 %v859
    %863 = vmatprep.subr.bf16.mxu0 0
    %864 = vmatpush1.bf16.xpose.msra.mxu0 0
    %865 = vmatprep.subr.bf16.mxu0 0
    %866 = vmatpush1.bf16.xpose.msra.mxu0 0
    %867 = vmatprep.subr.bf16.mxu0 0
    %868 = vmatpush1.bf16.xpose.msra.mxu0 0
    %869 = vmatprep.subr.bf16.mxu0 0
    %870 = vmatpush1.bf16.xpose.msra.mxu0 0
    %871 = vmatprep.subr.bf16.mxu0 0
    %872 = vmatpush1.bf16.xpose.msra.mxu0 0
    %873 = vmatprep.subr.bf16.mxu0 0
    %874 = vmatpush1.bf16.xpose.msra.mxu0 0
    %875 = vmatprep.subr.bf16.mxu0 0
    %876 = vmatpush1.bf16.xpose.msra.mxu0 0
    %877 = vmatprep.subr.bf16.mxu0 0
    %878 = vmatpush1.bf16.xpose.msra.mxu0 0
    %879 = vmatprep.subr.bf16.mxu0 0
    %880 = vmatpush1.bf16.xpose.msra.mxu0 0
    %881 = vmatprep.subr.bf16.mxu0 0
    %882 = vmatpush1.bf16.xpose.msra.mxu0 0
    %883 = vmatprep.subr.bf16.mxu0 0
    %884 = vmatpush1.bf16.xpose.msra.mxu0 0
    %885 = vmatprep.subr.bf16.mxu0 0
    %886 = vmatpush1.bf16.xpose.msra.mxu0 0
    %887 = vmatprep.subr.bf16.mxu0 0
    %888 = vmatpush1.bf16.xpose.msra.mxu0 0
    %889 = vmatprep.subr.bf16.mxu0 0
    %890 = vmatpush1.bf16.xpose.msra.mxu0 0
    %891 = vmatprep.subr.bf16.mxu0 0
    %892 = vmatpush1.bf16.xpose.msra.mxu0 0
    %893 = vmatprep.mubr.bf16.mxu0 0
    %894 = vmatmul.mubr.bf16.gmra.mrb[0].mxu0 %v856
    %v895 = vpop.f32.mrb[0].mxu0
    %v896 = vadd.f32 %v91, %v895
    %v897 = vpop.f32.mrb[0].mxu0
    %v898 = vpop.f32.mrb[0].mxu0
    %v899 = vadd.f32 %v92, %v898
    %v900 = vpop.f32.mrb[0].mxu0
    %901 = vdwg.mxu0
    %v902 = vsel %vm221, %v896, -inf
    %903 = vmax.xlane.f32.xlu0 %v902
    %v904 = vpop.xlane.xlu0 %903
    %v905 = vsel %vm221, %v899, -inf
    %906 = vmax.xlane.f32.xlu0 %v905
    %v907 = vpop.xlane.xlu0 %906
    %v908 = vsub.f32 %v896, %v904
    %v909 = vsub.f32 %v899, %v907
    %v910 = vmul.f32 %v908, 1.442695
    %v911 = vpow.pop %v910
    %v912 = vmul.f32 %v909, 1.442695
    %v913 = vpow.pop %v912
    %v914 = vsel %vm221, %v911, 0.0
    %915 = vadd.xlane.f32.xlu0 %v914
    %v916 = vpop.xlane.xlu0 %915
    %v917 = vsel %vm221, %v913, 0.0
    %918 = vadd.xlane.f32.xlu0 %v917
    %v919 = vpop.xlane.xlu0 %918
    %v920 = vrcp.pop %v916
    %v921 = vrcp.pop %v919
    %v922 = vmul.f32 %v911, %v920
    %v923 = vmul.f32 %v913, %v921
    %v924 = vpack.c.bf16 %v923, %v922
    %925 = vrot.lane.b32.xlu0 %v851, 64
    %v926 = vpop.permute.xlu0 %925
    %v929 = vsel %vm221, %v924, 0
    %931 = vmatprep.subr.bf16.mxu0 0
    %932 = vmatpush1.bf16.msra.mxu0 %v926
    %933 = vmatprep.subr.bf16.mxu0 0
    %934 = vmatpush1.bf16.msra.mxu0 0
    %935 = vmatprep.subr.bf16.mxu0 0
    %936 = vmatpush1.bf16.msra.mxu0 0
    %937 = vmatprep.subr.bf16.mxu0 0
    %938 = vmatpush1.bf16.msra.mxu0 0
    %939 = vmatprep.subr.bf16.mxu0 0
    %940 = vmatpush1.bf16.msra.mxu0 0
    %941 = vmatprep.subr.bf16.mxu0 0
    %942 = vmatpush1.bf16.msra.mxu0 0
    %943 = vmatprep.subr.bf16.mxu0 0
    %944 = vmatpush1.bf16.msra.mxu0 0
    %945 = vmatprep.subr.bf16.mxu0 0
    %946 = vmatpush1.bf16.msra.mxu0 0
    %947 = vmatprep.subr.bf16.mxu0 0
    %948 = vmatpush1.bf16.msra.mxu0 0
    %949 = vmatprep.subr.bf16.mxu0 0
    %950 = vmatpush1.bf16.msra.mxu0 0
    %951 = vmatprep.subr.bf16.mxu0 0
    %952 = vmatpush1.bf16.msra.mxu0 0
    %953 = vmatprep.subr.bf16.mxu0 0
    %954 = vmatpush1.bf16.msra.mxu0 0
    %955 = vmatprep.subr.bf16.mxu0 0
    %956 = vmatpush1.bf16.msra.mxu0 0
    %957 = vmatprep.subr.bf16.mxu0 0
    %958 = vmatpush1.bf16.msra.mxu0 0
    %959 = vmatprep.subr.bf16.mxu0 0
    %960 = vmatpush1.bf16.msra.mxu0 0
    %961 = vmatprep.subr.bf16.mxu0 0
    %962 = vmatpush1.bf16.msra.mxu0 0
    %963 = vmatprep.mubr.bf16.mxu0 0
    %964 = vmatmul.mubr.bf16.gmra.mrb[0].mxu0 %v929
    %v965 = vpop.f32.mrb[0].mxu0
    %v966 = vadd.f32 0.0, %v965
    %v967 = vpop.f32.mrb[0].mxu0
    %v968 = vpop.f32.mrb[0].mxu0
    %v969 = vadd.f32 0.0, %v968
    %v970 = vpop.f32.mrb[0].mxu0
    %971 = vdwg.mxu0
    %972 = vrot.lane.b32.xlu0 %v851, 112
    %v973 = vpop.permute.xlu0 %972
    %974 = vrot.lane.b32.xlu0 %v851, 80
    %v975 = vpop.permute.xlu0 %974
    %v977 = vsel %vm221, %v973, 0
    %v980 = vsel %vm221, %v975, 0
    %982 = vmatprep.subr.bf16.mxu0 0
    %983 = vmatpush1.bf16.xpose.msra.mxu0 %v980
    %984 = vmatprep.subr.bf16.mxu0 0
    %985 = vmatpush1.bf16.xpose.msra.mxu0 0
    %986 = vmatprep.subr.bf16.mxu0 0
    %987 = vmatpush1.bf16.xpose.msra.mxu0 0
    %988 = vmatprep.subr.bf16.mxu0 0
    %989 = vmatpush1.bf16.xpose.msra.mxu0 0
    %990 = vmatprep.subr.bf16.mxu0 0
    %991 = vmatpush1.bf16.xpose.msra.mxu0 0
    %992 = vmatprep.subr.bf16.mxu0 0
    %993 = vmatpush1.bf16.xpose.msra.mxu0 0
    %994 = vmatprep.subr.bf16.mxu0 0
    %995 = vmatpush1.bf16.xpose.msra.mxu0 0
    %996 = vmatprep.subr.bf16.mxu0 0
    %997 = vmatpush1.bf16.xpose.msra.mxu0 0
    %998 = vmatprep.subr.bf16.mxu0 0
    %999 = vmatpush1.bf16.xpose.msra.mxu0 0
    %1000 = vmatprep.subr.bf16.mxu0 0
    %1001 = vmatpush1.bf16.xpose.msra.mxu0 0
    %1002 = vmatprep.subr.bf16.mxu0 0
    %1003 = vmatpush1.bf16.xpose.msra.mxu0 0
    %1004 = vmatprep.subr.bf16.mxu0 0
    %1005 = vmatpush1.bf16.xpose.msra.mxu0 0
    %1006 = vmatprep.subr.bf16.mxu0 0
    %1007 = vmatpush1.bf16.xpose.msra.mxu0 0
    %1008 = vmatprep.subr.bf16.mxu0 0
    %1009 = vmatpush1.bf16.xpose.msra.mxu0 0
    %1010 = vmatprep.subr.bf16.mxu0 0
    %1011 = vmatpush1.bf16.xpose.msra.mxu0 0
    %1012 = vmatprep.subr.bf16.mxu0 0
    %1013 = vmatpush1.bf16.xpose.msra.mxu0 0
    %1014 = vmatprep.mubr.bf16.mxu0 0
    %1015 = vmatmul.mubr.bf16.gmra.mrb[0].mxu0 %v977
    %v1016 = vpop.f32.mrb[0].mxu0
    %v1017 = vadd.f32 %v91, %v1016
    %v1018 = vpop.f32.mrb[0].mxu0
    %v1019 = vpop.f32.mrb[0].mxu0
    %v1020 = vadd.f32 %v92, %v1019
    %v1021 = vpop.f32.mrb[0].mxu0
    %1022 = vdwg.mxu0
    %v1023 = vsel %vm221, %v1017, -inf
    %1024 = vmax.xlane.f32.xlu0 %v1023
    %v1025 = vpop.xlane.xlu0 %1024
    %v1026 = vsel %vm221, %v1020, -inf
    %1027 = vmax.xlane.f32.xlu0 %v1026
    %v1028 = vpop.xlane.xlu0 %1027
    %v1029 = vsub.f32 %v1017, %v1025
    %v1030 = vsub.f32 %v1020, %v1028
    %v1031 = vmul.f32 %v1029, 1.442695
    %v1032 = vpow.pop %v1031
    %v1033 = vmul.f32 %v1030, 1.442695
    %v1034 = vpow.pop %v1033
    %v1035 = vsel %vm221, %v1032, 0.0
    %1036 = vadd.xlane.f32.xlu0 %v1035
    %v1037 = vpop.xlane.xlu0 %1036
    %v1038 = vsel %vm221, %v1034, 0.0
    %1039 = vadd.xlane.f32.xlu0 %v1038
    %v1040 = vpop.xlane.xlu0 %1039
    %v1041 = vrcp.pop %v1037
    %v1042 = vrcp.pop %v1040
    %v1043 = vmul.f32 %v1032, %v1041
    %v1044 = vmul.f32 %v1034, %v1042
    %v1045 = vpack.c.bf16 %v1044, %v1043
    %1046 = vrot.lane.b32.xlu0 %v851, 48
    %v1047 = vpop.permute.xlu0 %1046
    %v1050 = vsel %vm221, %v1045, 0
    %1052 = vmatprep.subr.bf16.mxu0 0
    %1053 = vmatpush1.bf16.msra.mxu0 %v1047
    %1054 = vmatprep.subr.bf16.mxu0 0
    %1055 = vmatpush1.bf16.msra.mxu0 0
    %1056 = vmatprep.subr.bf16.mxu0 0
    %1057 = vmatpush1.bf16.msra.mxu0 0
    %1058 = vmatprep.subr.bf16.mxu0 0
    %1059 = vmatpush1.bf16.msra.mxu0 0
    %1060 = vmatprep.subr.bf16.mxu0 0
    %1061 = vmatpush1.bf16.msra.mxu0 0
    %1062 = vmatprep.subr.bf16.mxu0 0
    %1063 = vmatpush1.bf16.msra.mxu0 0
    %1064 = vmatprep.subr.bf16.mxu0 0
    %1065 = vmatpush1.bf16.msra.mxu0 0
    %1066 = vmatprep.subr.bf16.mxu0 0
    %1067 = vmatpush1.bf16.msra.mxu0 0
    %1068 = vmatprep.subr.bf16.mxu0 0
    %1069 = vmatpush1.bf16.msra.mxu0 0
    %1070 = vmatprep.subr.bf16.mxu0 0
    %1071 = vmatpush1.bf16.msra.mxu0 0
    %1072 = vmatprep.subr.bf16.mxu0 0
    %1073 = vmatpush1.bf16.msra.mxu0 0
    %1074 = vmatprep.subr.bf16.mxu0 0
    %1075 = vmatpush1.bf16.msra.mxu0 0
    %1076 = vmatprep.subr.bf16.mxu0 0
    %1077 = vmatpush1.bf16.msra.mxu0 0
    %1078 = vmatprep.subr.bf16.mxu0 0
    %1079 = vmatpush1.bf16.msra.mxu0 0
    %1080 = vmatprep.subr.bf16.mxu0 0
    %1081 = vmatpush1.bf16.msra.mxu0 0
    %1082 = vmatprep.subr.bf16.mxu0 0
    %1083 = vmatpush1.bf16.msra.mxu0 0
    %1084 = vmatprep.mubr.bf16.mxu0 0
    %1085 = vmatmul.mubr.bf16.gmra.mrb[0].mxu0 %v1050
    %v1086 = vpop.f32.mrb[0].mxu0
    %v1087 = vadd.f32 0.0, %v1086
    %v1088 = vpop.f32.mrb[0].mxu0
    %v1089 = vpop.f32.mrb[0].mxu0
    %v1090 = vadd.f32 0.0, %v1089
    %v1091 = vpop.f32.mrb[0].mxu0
    %1092 = vdwg.mxu0
    %1095 = vrot.lane.b32.xlu0 %v1087, 16
    %v1096 = vpop.permute.xlu0 %1095
    %1097 = vrot.lane.b32.xlu0 %v1090, 16
    %v1098 = vpop.permute.xlu0 %1097
    %v1101 = vsel %vm221, %v966, %v1096
    %v1102 = vsel %vm221, %v969, %v1098
    %v1103 = vpack.c.bf16 %v1102, %v1101
    %v1104 = vlaneseq
    %v1105 = vshrl.u32 %v1104, 7
    %v1106 = vsub.s32 1, %v1105
    %v1107 = vrot.slane %v765, %v1106
    %v1112 = vunpack.c.l.b16 %v772
    %v1113 = vunpack.c.l.b16 %v773
    %v1114 = vunpack.c.l.b16 %v774
    %v1115 = vunpack.c.l.b16 %v775
    %v1116 = vpack.c.b16 %v1113, %v1112
    %v1117 = vpack.c.b16 %v1115, %v1114
    %v1121 = vsel %vm95, %v1103, 0
    %1123 = vmatprep.subr.bf16.mxu0 0
    %1124 = vmatpush1.bf16.msra.mxu0 %v1116
    %1125 = vmatprep.subr.bf16.mxu0 0
    %1126 = vmatpush1.bf16.msra.mxu0 %v1117
    %1127 = vmatprep.subr.bf16.mxu0 0
    %1128 = vmatpush1.bf16.msra.mxu0 0
    %1129 = vmatprep.subr.bf16.mxu0 0
    %1130 = vmatpush1.bf16.msra.mxu0 0
    %1131 = vmatprep.subr.bf16.mxu0 0
    %1132 = vmatpush1.bf16.msra.mxu0 0
    %1133 = vmatprep.subr.bf16.mxu0 0
    %1134 = vmatpush1.bf16.msra.mxu0 0
    %1135 = vmatprep.subr.bf16.mxu0 0
    %1136 = vmatpush1.bf16.msra.mxu0 0
    %1137 = vmatprep.subr.bf16.mxu0 0
    %1138 = vmatpush1.bf16.msra.mxu0 0
    %1139 = vmatprep.subr.bf16.mxu0 0
    %1140 = vmatpush1.bf16.msra.mxu0 0
    %1141 = vmatprep.subr.bf16.mxu0 0
    %1142 = vmatpush1.bf16.msra.mxu0 0
    %1143 = vmatprep.subr.bf16.mxu0 0
    %1144 = vmatpush1.bf16.msra.mxu0 0
    %1145 = vmatprep.subr.bf16.mxu0 0
    %1146 = vmatpush1.bf16.msra.mxu0 0
    %1147 = vmatprep.subr.bf16.mxu0 0
    %1148 = vmatpush1.bf16.msra.mxu0 0
    %1149 = vmatprep.subr.bf16.mxu0 0
    %1150 = vmatpush1.bf16.msra.mxu0 0
    %1151 = vmatprep.subr.bf16.mxu0 0
    %1152 = vmatpush1.bf16.msra.mxu0 0
    %1153 = vmatprep.subr.bf16.mxu0 0
    %1154 = vmatpush1.bf16.msra.mxu0 0
    %1155 = vmatprep.mubr.bf16.mxu0 0
    %1156 = vmatmul.mubr.bf16.gmra.mrb[0].mxu0 %v1121
    %v1157 = vpop.f32.mrb[0].mxu0
    %v1158 = vadd.f32 %v1107, %v1157
    %v1159 = vpop.f32.mrb[0].mxu0
    %v1160 = vpop.f32.mrb[0].mxu0
    %v1161 = vadd.f32 %v1107, %v1160
    %v1162 = vpop.f32.mrb[0].mxu0
    %1163 = vdwg.mxu0
    %v1164 = vadd.f32 %v1158, %v762
    %v1165 = vadd.f32 %v1161, %v763
    %v1166 = vsel %vm95, %v1164, 0.0
    %1167 = vadd.xlane.f32.xlu0 %v1166
    %v1168 = vpop.xlane.xlu0 %1167
    %v1169 = vsel %vm95, %v1165, 0.0
    %1170 = vadd.xlane.f32.xlu0 %v1169
    %v1171 = vpop.xlane.xlu0 %1170
    %v1172 = vmul.f32 %v1168, %v102
    %v1173 = vmul.f32 %v1171, %v102
    %v1174 = vsub.f32 %v1164, %v1172
    %v1175 = vsub.f32 %v1165, %v1173
    %v1176 = vmul.f32 %v1174, %v1174
    %v1177 = vmul.f32 %v1175, %v1175
    %v1178 = vsel %vm95, %v1176, 0.0
    %1179 = vadd.xlane.f32.xlu0 %v1178
    %v1180 = vpop.xlane.xlu0 %1179
    %v1181 = vsel %vm95, %v1177, 0.0
    %1182 = vadd.xlane.f32.xlu0 %v1181
    %v1183 = vpop.xlane.xlu0 %1182
    %v1184 = vmul.f32 %v1180, %v102
    %v1185 = vmul.f32 %v1183, %v102
    %v1186 = vadd.f32 %v1184, 1e-12
    %v1187 = vadd.f32 %v1185, 1e-12
    %v1188 = vrsqrt.pop %v1186
    %v1189 = vrsqrt.pop %v1187
    %v1190 = vmul.f32 %v1174, %v1188
    %v1191 = vmul.f32 %v1175, %v1189
    %v1192 = vlaneseq
    %v1193 = vshrl.u32 %v1192, 7
    %v1194 = vsub.s32 4, %v1193
    %v1195 = vrot.slane %v765, %v1194
    %v1196 = vmul.f32 %v1190, %v1195
    %v1197 = vmul.f32 %v1191, %v1195
    %v1198 = vlaneseq
    %v1199 = vshrl.u32 %v1198, 7
    %v1200 = vsub.s32 5, %v1199
    %v1201 = vrot.slane %v765, %v1200
    %v1202 = vadd.f32 %v1196, %v1201
    %v1203 = vadd.f32 %v1197, %v1201
    %v1204 = vpack.c.bf16 %v1203, %v1202
    %v1205 = vlaneseq
    %v1206 = vshrl.u32 %v1205, 7
    %v1207 = vsub.s32 2, %v1206
    %v1208 = vrot.slane %v765, %v1207
    %v1213 = vunpack.c.l.b16 %v777
    %v1214 = vunpack.c.l.b16 %v778
    %v1215 = vunpack.c.l.b16 %v779
    %v1216 = vunpack.c.l.b16 %v780
    %v1217 = vpack.c.b16 %v1214, %v1213
    %v1218 = vpack.c.b16 %v1216, %v1215
    %v1222 = vsel %vm95, %v1204, 0
    %1224 = vmatprep.subr.bf16.mxu0 0
    %1225 = vmatpush1.bf16.msra.mxu0 %v1217
    %1226 = vmatprep.subr.bf16.mxu0 0
    %1227 = vmatpush1.bf16.msra.mxu0 %v1218
    %1228 = vmatprep.subr.bf16.mxu0 0
    %1229 = vmatpush1.bf16.msra.mxu0 0
    %1230 = vmatprep.subr.bf16.mxu0 0
    %1231 = vmatpush1.bf16.msra.mxu0 0
    %1232 = vmatprep.subr.bf16.mxu0 0
    %1233 = vmatpush1.bf16.msra.mxu0 0
    %1234 = vmatprep.subr.bf16.mxu0 0
    %1235 = vmatpush1.bf16.msra.mxu0 0
    %1236 = vmatprep.subr.bf16.mxu0 0
    %1237 = vmatpush1.bf16.msra.mxu0 0
    %1238 = vmatprep.subr.bf16.mxu0 0
    %1239 = vmatpush1.bf16.msra.mxu0 0
    %1240 = vmatprep.subr.bf16.mxu0 0
    %1241 = vmatpush1.bf16.msra.mxu0 0
    %1242 = vmatprep.subr.bf16.mxu0 0
    %1243 = vmatpush1.bf16.msra.mxu0 0
    %1244 = vmatprep.subr.bf16.mxu0 0
    %1245 = vmatpush1.bf16.msra.mxu0 0
    %1246 = vmatprep.subr.bf16.mxu0 0
    %1247 = vmatpush1.bf16.msra.mxu0 0
    %1248 = vmatprep.subr.bf16.mxu0 0
    %1249 = vmatpush1.bf16.msra.mxu0 0
    %1250 = vmatprep.subr.bf16.mxu0 0
    %1251 = vmatpush1.bf16.msra.mxu0 0
    %1252 = vmatprep.subr.bf16.mxu0 0
    %1253 = vmatpush1.bf16.msra.mxu0 0
    %1254 = vmatprep.subr.bf16.mxu0 0
    %1255 = vmatpush1.bf16.msra.mxu0 0
    %1256 = vmatprep.mubr.bf16.mxu0 0
    %1257 = vmatmul.mubr.bf16.gmra.mrb[0].mxu0 %v1222
    %v1258 = vpop.f32.mrb[0].mxu0
    %v1259 = vadd.f32 %v1208, %v1258
    %v1260 = vpop.f32.mrb[0].mxu0
    %v1261 = vpop.f32.mrb[0].mxu0
    %v1262 = vadd.f32 %v1208, %v1261
    %v1263 = vpop.f32.mrb[0].mxu0
    %1264 = vdwg.mxu0
    %v1265 = vmul.f32 %v1259, 0.5
    %v1266 = vmul.f32 %v1262, 0.5
    %v1267 = vmul.f32 %v1259, 0.044715
    %v1268 = vmul.f32 %v1262, 0.044715
    %v1269 = vmul.f32 %v1267, %v1259
    %v1270 = vmul.f32 %v1268, %v1262
    %v1271 = vmul.f32 %v1269, %v1259
    %v1272 = vmul.f32 %v1270, %v1262
    %v1273 = vadd.f32 %v1259, %v1271
    %v1274 = vadd.f32 %v1262, %v1272
    %v1275 = vmul.f32 %v1273, 0.7978846
    %v1276 = vmul.f32 %v1274, 0.7978846
    %v1277 = vtanh.pop %v1275
    %v1278 = vtanh.pop %v1276
    %v1279 = vadd.f32 %v1277, 1.0
    %v1280 = vadd.f32 %v1278, 1.0
    %v1281 = vmul.f32 %v1265, %v1279
    %v1282 = vmul.f32 %v1266, %v1280
    %v1283 = vpack.c.bf16 %v1282, %v1281
    %v1284 = vlaneseq
    %v1285 = vshrl.u32 %v1284, 7
    %v1286 = vsub.s32 3, %v1285
    %v1287 = vrot.slane %v765, %v1286
    %v1296 = vunpack.c.l.b16 %v782
    %v1297 = vunpack.c.l.b16 %v783
    %v1298 = vunpack.c.l.b16 %v784
    %v1299 = vunpack.c.l.b16 %v785
    %v1300 = vunpack.c.l.b16 %v786
    %v1301 = vunpack.c.l.b16 %v787
    %v1302 = vunpack.c.l.b16 %v788
    %v1303 = vunpack.c.l.b16 %v789
    %v1304 = vpack.c.b16 %v1297, %v1296
    %v1305 = vpack.c.b16 %v1299, %v1298
    %v1306 = vpack.c.b16 %v1301, %v1300
    %v1307 = vpack.c.b16 %v1303, %v1302
    %v1313 = vsel %vm679, %v1283, 0
    %1315 = vmatprep.subr.bf16.mxu0 0
    %1316 = vmatpush1.bf16.msra.mxu0 %v1304
    %1317 = vmatprep.subr.bf16.mxu0 0
    %1318 = vmatpush1.bf16.msra.mxu0 %v1305
    %1319 = vmatprep.subr.bf16.mxu0 0
    %1320 = vmatpush1.bf16.msra.mxu0 %v1306
    %1321 = vmatprep.subr.bf16.mxu0 0
    %1322 = vmatpush1.bf16.msra.mxu0 %v1307
    %1323 = vmatprep.subr.bf16.mxu0 0
    %1324 = vmatpush1.bf16.msra.mxu0 0
    %1325 = vmatprep.subr.bf16.mxu0 0
    %1326 = vmatpush1.bf16.msra.mxu0 0
    %1327 = vmatprep.subr.bf16.mxu0 0
    %1328 = vmatpush1.bf16.msra.mxu0 0
    %1329 = vmatprep.subr.bf16.mxu0 0
    %1330 = vmatpush1.bf16.msra.mxu0 0
    %1331 = vmatprep.subr.bf16.mxu0 0
    %1332 = vmatpush1.bf16.msra.mxu0 0
    %1333 = vmatprep.subr.bf16.mxu0 0
    %1334 = vmatpush1.bf16.msra.mxu0 0
    %1335 = vmatprep.subr.bf16.mxu0 0
    %1336 = vmatpush1.bf16.msra.mxu0 0
    %1337 = vmatprep.subr.bf16.mxu0 0
    %1338 = vmatpush1.bf16.msra.mxu0 0
    %1339 = vmatprep.subr.bf16.mxu0 0
    %1340 = vmatpush1.bf16.msra.mxu0 0
    %1341 = vmatprep.subr.bf16.mxu0 0
    %1342 = vmatpush1.bf16.msra.mxu0 0
    %1343 = vmatprep.subr.bf16.mxu0 0
    %1344 = vmatpush1.bf16.msra.mxu0 0
    %1345 = vmatprep.subr.bf16.mxu0 0
    %1346 = vmatpush1.bf16.msra.mxu0 0
    %1347 = vmatprep.mubr.bf16.mxu0 0
    %1348 = vmatmul.mubr.bf16.gmra.mrb[0].mxu0 %v1313
    %v1349 = vpop.f32.mrb[0].mxu0
    %v1350 = vadd.f32 %v1287, %v1349
    %v1351 = vpop.f32.mrb[0].mxu0
    %v1352 = vpop.f32.mrb[0].mxu0
    %v1353 = vadd.f32 %v1287, %v1352
    %v1354 = vpop.f32.mrb[0].mxu0
    %1355 = vdwg.mxu0
    %v1356 = vadd.f32 %v1350, %v1202
    %v1357 = vadd.f32 %v1353, %v1203
    %v1358 = vsel %vm95, %v1356, 0.0
    %1359 = vadd.xlane.f32.xlu0 %v1358
    %v1360 = vpop.xlane.xlu0 %1359
    %v1361 = vsel %vm95, %v1357, 0.0
    %1362 = vadd.xlane.f32.xlu0 %v1361
    %v1363 = vpop.xlane.xlu0 %1362
    %v1364 = vmul.f32 %v1360, %v102
    %v1365 = vmul.f32 %v1363, %v102
    %v1366 = vsub.f32 %v1356, %v1364
    %v1367 = vsub.f32 %v1357, %v1365
    %v1368 = vmul.f32 %v1366, %v1366
    %v1369 = vmul.f32 %v1367, %v1367
    %v1370 = vsel %vm95, %v1368, 0.0
    %1371 = vadd.xlane.f32.xlu0 %v1370
    %v1372 = vpop.xlane.xlu0 %1371
    %v1373 = vsel %vm95, %v1369, 0.0
    %1374 = vadd.xlane.f32.xlu0 %v1373
    %v1375 = vpop.xlane.xlu0 %1374
    %v1376 = vmul.f32 %v1372, %v102
    %v1377 = vmul.f32 %v1375, %v102
    %v1378 = vadd.f32 %v1376, 1e-12
    %v1379 = vadd.f32 %v1377, 1e-12
    %v1380 = vrsqrt.pop %v1378
    %v1381 = vrsqrt.pop %v1379
    %v1382 = vmul.f32 %v1366, %v1380
    %v1383 = vmul.f32 %v1367, %v1381
    %v1384 = vlaneseq
    %v1385 = vshrl.u32 %v1384, 7
    %v1386 = vsub.s32 6, %v1385
    %v1387 = vrot.slane %v765, %v1386
    %v1388 = vmul.f32 %v1382, %v1387
    %v1389 = vmul.f32 %v1383, %v1387
    %v1390 = vlaneseq
    %v1391 = vshrl.u32 %v1390, 7
    %v1392 = vsub.s32 7, %v1391
    %v1393 = vrot.slane %v765, %v1392
    %v1394 = vadd.f32 %v1388, %v1393
    %v1395 = vadd.f32 %v1389, %v1393
    %v1397 = vrot.slane %v1395, 7
    %vm1399 = vcmask 1040384
    %v1400 = vsel %vm1399, %v1394, %v1397
    %v1401 = vld [vmem:[%s8] sm:$0xf]
    %v1402 = vld [vmem:[%s8 + $0x4] sm:$0xf]
    %v1403 = vld [vmem:[%s8 + $0x8] sm:$0xf]
    %v1404 = vld [vmem:[%s8 + $0xc] sm:$0xf]
    %v1405 = vpack.c.bf16 %v1400, %v1400
    %v1406 = vlaneseq
    %v1407 = vshrl.u32 %v1406, 7
    %v1408 = vsub.s32 2, %v1407
    %v1409 = vrot.slane %v90, %v1408
    %v1414 = vunpack.c.l.b16 %v1401
    %v1415 = vunpack.c.l.b16 %v1402
    %v1416 = vunpack.c.l.b16 %v1403
    %v1417 = vunpack.c.l.b16 %v1404
    %v1418 = vpack.c.b16 %v1415, %v1414
    %v1419 = vpack.c.b16 %v1417, %v1416
    %v1423 = vsel %vm95, %v1405, 0
    %1425 = vmatprep.subr.bf16.mxu0 0
    %1426 = vmatpush1.bf16.msra.mxu0 %v1418
    %1427 = vmatprep.subr.bf16.mxu0 0
    %1428 = vmatpush1.bf16.msra.mxu0 %v1419
    %1429 = vmatprep.subr.bf16.mxu0 0
    %1430 = vmatpush1.bf16.msra.mxu0 0
    %1431 = vmatprep.subr.bf16.mxu0 0
    %1432 = vmatpush1.bf16.msra.mxu0 0
    %1433 = vmatprep.subr.bf16.mxu0 0
    %1434 = vmatpush1.bf16.msra.mxu0 0
    %1435 = vmatprep.subr.bf16.mxu0 0
    %1436 = vmatpush1.bf16.msra.mxu0 0
    %1437 = vmatprep.subr.bf16.mxu0 0
    %1438 = vmatpush1.bf16.msra.mxu0 0
    %1439 = vmatprep.subr.bf16.mxu0 0
    %1440 = vmatpush1.bf16.msra.mxu0 0
    %1441 = vmatprep.subr.bf16.mxu0 0
    %1442 = vmatpush1.bf16.msra.mxu0 0
    %1443 = vmatprep.subr.bf16.mxu0 0
    %1444 = vmatpush1.bf16.msra.mxu0 0
    %1445 = vmatprep.subr.bf16.mxu0 0
    %1446 = vmatpush1.bf16.msra.mxu0 0
    %1447 = vmatprep.subr.bf16.mxu0 0
    %1448 = vmatpush1.bf16.msra.mxu0 0
    %1449 = vmatprep.subr.bf16.mxu0 0
    %1450 = vmatpush1.bf16.msra.mxu0 0
    %1451 = vmatprep.subr.bf16.mxu0 0
    %1452 = vmatpush1.bf16.msra.mxu0 0
    %1453 = vmatprep.subr.bf16.mxu0 0
    %1454 = vmatpush1.bf16.msra.mxu0 0
    %1455 = vmatprep.subr.bf16.mxu0 0
    %1456 = vmatpush1.bf16.msra.mxu0 0
    %1457 = vmatprep.mubr.bf16.mxu0 0
    %1458 = vmatmul.mubr.bf16.gmra.mrb[0].mxu0 %v1423
    %v1459 = vpop.f32.mrb[0].mxu0
    %v1460 = vadd.f32 %v1409, %v1459
    %v1461 = vpop.f32.mrb[0].mxu0
    %v1462 = vpop.f32.mrb[0].mxu0
    %v1463 = vpop.f32.mrb[0].mxu0
    %1464 = vdwg.mxu0
    %v1465 = vtanh.pop %v1460
    %v1466 = vld [vmem:[%s9] sm:$0xf]
    %v1467 = vld [vmem:[%s9 + $0x4] sm:$0xf]
    %v1468 = vld [vmem:[%s9 + $0x8] sm:$0xf]
    %v1469 = vld [vmem:[%s9 + $0xc] sm:$0xf]
    %v1470 = vpack.c.bf16 %v1465, %v1465
    %v1471 = vlaneseq
    %v1472 = vshrl.u32 %v1471, 7
    %v1473 = vsub.s32 3, %v1472
    %v1474 = vrot.slane %v90, %v1473
    %v1479 = vunpack.c.l.b16 %v1466
    %v1480 = vunpack.c.l.b16 %v1467
    %v1481 = vunpack.c.l.b16 %v1468
    %v1482 = vunpack.c.l.b16 %v1469
    %v1483 = vpack.c.b16 %v1480, %v1479
    %v1484 = vpack.c.b16 %v1482, %v1481
    %v1488 = vsel %vm95, %v1470, 0
    %1490 = vmatprep.subr.bf16.mxu0 0
    %1491 = vmatpush1.bf16.msra.mxu0 %v1483
    %1492 = vmatprep.subr.bf16.mxu0 0
    %1493 = vmatpush1.bf16.msra.mxu0 %v1484
    %1494 = vmatprep.subr.bf16.mxu0 0
    %1495 = vmatpush1.bf16.msra.mxu0 0
    %1496 = vmatprep.subr.bf16.mxu0 0
    %1497 = vmatpush1.bf16.msra.mxu0 0
    %1498 = vmatprep.subr.bf16.mxu0 0
    %1499 = vmatpush1.bf16.msra.mxu0 0
    %1500 = vmatprep.subr.bf16.mxu0 0
    %1501 = vmatpush1.bf16.msra.mxu0 0
    %1502 = vmatprep.subr.bf16.mxu0 0
    %1503 = vmatpush1.bf16.msra.mxu0 0
    %1504 = vmatprep.subr.bf16.mxu0 0
    %1505 = vmatpush1.bf16.msra.mxu0 0
    %1506 = vmatprep.subr.bf16.mxu0 0
    %1507 = vmatpush1.bf16.msra.mxu0 0
    %1508 = vmatprep.subr.bf16.mxu0 0
    %1509 = vmatpush1.bf16.msra.mxu0 0
    %1510 = vmatprep.subr.bf16.mxu0 0
    %1511 = vmatpush1.bf16.msra.mxu0 0
    %1512 = vmatprep.subr.bf16.mxu0 0
    %1513 = vmatpush1.bf16.msra.mxu0 0
    %1514 = vmatprep.subr.bf16.mxu0 0
    %1515 = vmatpush1.bf16.msra.mxu0 0
    %1516 = vmatprep.subr.bf16.mxu0 0
    %1517 = vmatpush1.bf16.msra.mxu0 0
    %1518 = vmatprep.subr.bf16.mxu0 0
    %1519 = vmatpush1.bf16.msra.mxu0 0
    %1520 = vmatprep.subr.bf16.mxu0 0
    %1521 = vmatpush1.bf16.msra.mxu0 0
    %1522 = vmatprep.mubr.bf16.mxu0 0
    %1523 = vmatmul.mubr.bf16.gmra.mrb[0].mxu0 %v1488
    %v1524 = vpop.f32.mrb[0].mxu0
    %v1525 = vadd.f32 %v1474, %v1524
    %v1526 = vpop.f32.mrb[0].mxu0
    %v1527 = vpop.f32.mrb[0].mxu0
    %v1528 = vpop.f32.mrb[0].mxu0
    %1529 = vdwg.mxu0
    %1530 = vst [vmem:[#allocation10] sm:$0x3] %v1525
    // Predicated region
    $region58: #{tpu_custom_call.1} parent=1 // pred_check
      _
    $region59: #{tpu_custom_call.1} parent=1 // pred_check_branch
      %1532 = sbr.rel (0) target = $region61
    $region60: #{tpu_custom_call.1} parent=1 // pred_region
      %s1534 = ssub.s32 32, 32
      %1535 = vsyncadd [#allocation4], %s1534
      %s1537 = sshll.u32 [#allocation10], 4
      %s1538 = int_to_ptr.vmem [resolvable:$true] %s1537
      %1540 = dma.vmem_to_hbm [thread:$0]  %s1538, 32, %s10, [#allocation4]
    $region61: #{tpu_custom_call.1} parent=1 // pred_fallthru
      _
    // Predicated region
    $region62: #{tpu_custom_call.1} parent=1 // pred_check
      _
    $region63: #{tpu_custom_call.1} parent=1 // pred_check_branch
      %1542 = sbr.rel (0) target = $region65
    $region64: #{tpu_custom_call.1} parent=1 // pred_region
      %1543 = dma.done [#allocation4], 32
    $region65: #{tpu_custom_call.1} parent=1 // pred_fallthru
      _
    %1544 = vsyncpa [#allocation3], 1
    %1545 = vsyncpa [#allocation6], 1
    %1546 = vsyncpa [#allocation9], 1
    %1547 = vsyncpa [#allocation4], 1

</llo_original>
